<compile_context>
chip_gen: v7x
topology: tpu7x:2x2x1
jax: 0.10.0
libtpu: 0.0.40
codegen_flags: <defaults>
</compile_context>

<pallas_src>
import functools
import math

import jax
import jax.numpy as jnp
import numpy as np
from jax import lax
from jax.experimental import pallas as pl
from jax.experimental.pallas import tpu as pltpu


# ----------------------------- in-kernel helpers -----------------------------

def _layernorm(x, gamma, beta, eps=1e-5):
    # x: (T, D) f32, gamma/beta: (1, D) f32
    mu = jnp.mean(x, axis=-1, keepdims=True)
    var = jnp.mean((x - mu) ** 2, axis=-1, keepdims=True)
    return (x - mu) * lax.rsqrt(var + eps) * gamma + beta


# ------------------------------- Pallas kernel -------------------------------

def clip_layers_kernel(x_ref,
                       g1_ref, b1_ref, wqkv_ref, bqkv_ref, wo_ref, bo_ref,
                       g2_ref, b2_ref, w1_ref, bb1_ref, w2_ref, bb2_ref,
                       gF_ref, bF_ref,
                       o_ref,
                       state_ref, attn_ref, q_scr, k_scr, v_scr,
                       *, n_head, d_head, heads_per_group):
    l = pl.program_id(1)
    n_layers = pl.num_programs(1)

    # Load this batch element's activations into the resident VMEM state at layer 0.
    @pl.when(l == 0)
    def _():
        state_ref[...] = x_ref[0]

    x = state_ref[...]                                   # (T, D) f32
    T, D = x.shape

    # ---------------- attention block ----------------
    residue = x
    xn = _layernorm(x, g1_ref[0], b1_ref[0])
    qkv = jnp.dot(xn.astype(jnp.bfloat16), wqkv_ref[0],
                  preferred_element_type=jnp.float32) + bqkv_ref[0]        # (T, 3D) f32

    scale = 1.0 / math.sqrt(d_head)
    # Fold 1/sqrt(d_head) into q (O(T*D) elementwise instead of O(T^2) on the scores),
    # and stage bf16 q/k/v in VMEM so the f32 (T, 3D) qkv value is not live across heads.
    q_scr[...] = (qkv[:, :D] * scale).astype(jnp.bfloat16)
    k_scr[...] = qkv[:, D:2 * D].astype(jnp.bfloat16)
    v_scr[...] = qkv[:, 2 * D:].astype(jnp.bfloat16)

    row = lax.broadcasted_iota(jnp.int32, (T, T), 0)
    col = lax.broadcasted_iota(jnp.int32, (T, T), 1)
    causal = col > row                                   # torch triu(diagonal=1)
    dn_nt = (((1,), (1,)), ((), ()))                     # q @ k^T without materializing .T

    gw = heads_per_group * d_head                        # lane width of one head group
    n_groups = n_head // heads_per_group

    def group_body(g, carry):
        off = pl.multiple_of(g * gw, gw)
        qg = q_scr[:, pl.ds(off, gw)]                    # (T, gw) bf16, lane-dense load
        kg = k_scr[:, pl.ds(off, gw)]
        vg = v_scr[:, pl.ds(off, gw)]
        outs = []
        for h in range(heads_per_group):                 # small static unroll within a group
            sl = slice(h * d_head, (h + 1) * d_head)
            s = lax.dot_general(qg[:, sl], kg[:, sl], dn_nt,
                                preferred_element_type=jnp.float32)        # (T, T) f32
            s = jnp.where(causal, -1e30, s)
            m = jnp.max(s, axis=-1, keepdims=True)
            p = jnp.exp(s - m)
            inv_l = pl.reciprocal(jnp.sum(p, axis=-1, keepdims=True), approx=True)
            o_h = jnp.dot(p.astype(jnp.bfloat16), vg[:, sl],
                          preferred_element_type=jnp.float32)              # (T, dh) f32
            outs.append((o_h * inv_l).astype(attn_ref.dtype))
        grp = outs[0] if len(outs) == 1 else jnp.concatenate(outs, axis=-1)
        attn_ref[:, pl.ds(off, gw)] = grp                # one lane-dense store per group
        return carry

    lax.fori_loop(0, n_groups, group_body, 0, unroll=False)

    attn = jnp.dot(attn_ref[...], wo_ref[0],
                   preferred_element_type=jnp.float32) + bo_ref[0]
    x = attn + residue

    # ---------------- MLP block (QuickGELU, f32 elementwise) ----------------
    residue = x
    xn = _layernorm(x, g2_ref[0], b2_ref[0])
    h1 = jnp.dot(xn.astype(jnp.bfloat16), w1_ref[0],
                 preferred_element_type=jnp.float32) + bb1_ref[0]
    h1 = h1 * jax.nn.sigmoid(1.702 * h1)
    h2 = jnp.dot(h1.astype(jnp.bfloat16), w2_ref[0],
                 preferred_element_type=jnp.float32) + bb2_ref[0]
    x = h2 + residue

    state_ref[...] = x                                   # carry activation to next layer

    # Final CLIP LayerNorm fused into the last layer; only then is the output written.
    @pl.when(l == n_layers - 1)
    def _():
        o_ref[0] = _layernorm(x, gF_ref[...], bF_ref[...]).astype(o_ref.dtype)


# ------------------------------- wrappers -------------------------------

_LAYER_WEIGHT_KEYS = ("g1", "b1", "wqkv", "bqkv", "wo", "bo",
                      "g2", "b2", "w1", "bb1", "w2", "bb2")
_BF16_WEIGHT_KEYS = ("wqkv", "wo", "w1", "w2")           # MXU operands shipped as bf16


def pack_params(params):
    """Stack per-layer weights along a leading L axis; pre-cast MXU weights to bf16 ONCE."""
    layers = params["layers"]
    packed = {}
    for key in _LAYER_WEIGHT_KEYS:
        w = jnp.stack([lp[key] for lp in layers], axis=0)
        if key in _BF16_WEIGHT_KEYS:
            w = w.astype(jnp.bfloat16)
        packed[key] = w
    packed["gF"] = params["gF"]
    packed["bF"] = params["bF"]
    packed["tok_emb"] = params["tok_emb"]
    packed["pos_emb"] = params["pos_emb"]
    return packed


def run_clip_layers(x, packed, n_head):
    B, T, D = x.shape
    L = packed["wqkv"].shape[0]
    d_head = D // n_head

    # Group heads so each group's output is a full 128-lane (or full-D) slab.
    if d_head < 128 and 128 % d_head == 0 and n_head % (128 // d_head) == 0:
        heads_per_group = min(n_head, 128 // d_head)
    else:
        heads_per_group = 1

    stacked = [packed[k] for k in _LAYER_WEIGHT_KEYS]
    finals = [packed["gF"], packed["bF"]]

    def layer_spec(a):                                   # (L, ...) -> (1, ...) block @ layer l
        tail = a.shape[1:]
        zeros = (0,) * len(tail)
        return pl.BlockSpec((1,) + tail, lambda b, l, _z=zeros: (l,) + _z)

    def const_spec(a):                                   # whole array, constant over the grid
        zeros = (0,) * a.ndim
        return pl.BlockSpec(a.shape, lambda b, l, _z=zeros: _z)

    kernel = functools.partial(clip_layers_kernel, n_head=n_head, d_head=d_head,
                               heads_per_group=heads_per_group)
    return pl.pallas_call(
        kernel,
        out_shape=jax.ShapeDtypeStruct((B, T, D), x.dtype),
        grid_spec=pltpu.PrefetchScalarGridSpec(
            num_scalar_prefetch=0,
            grid=(B, L),                                  # layer axis innermost
            in_specs=[pl.BlockSpec((1, T, D), lambda b, l: (b, 0, 0))]
                     + [layer_spec(w) for w in stacked]
                     + [const_spec(w) for w in finals],
            out_specs=pl.BlockSpec((1, T, D), lambda b, l: (b, 0, 0)),
            scratch_shapes=[pltpu.VMEM((T, D), jnp.float32),    # resident activation state
                            pltpu.VMEM((T, D), jnp.bfloat16),   # attention output slab
                            pltpu.VMEM((T, D), jnp.bfloat16),   # q (pre-scaled)
                            pltpu.VMEM((T, D), jnp.bfloat16),   # k
                            pltpu.VMEM((T, D), jnp.bfloat16)]), # v
        input_output_aliases={0: 0},                      # activations in-place in HBM
        compiler_params=pltpu.CompilerParams(
            dimension_semantics=("parallel", "arbitrary"),  # batch shards across TCs (v7x)
            vmem_limit_bytes=52 * 1024 * 1024),           # < 64 MiB v7x physical per-TC
    )(x, *stacked, *finals)


def clip_forward(tokens, packed, n_head):
    tokens = tokens.astype(jnp.int32)                    # tokens.type(torch.long)
    # CLIPEmbedding: token embedding gather + position embedding add (plain-JAX glue)
    x = packed["tok_emb"][tokens] + packed["pos_emb"][None, :, :]
    return run_clip_layers(x, packed, n_head)


clip_forward_jit = jax.jit(clip_forward, static_argnums=2)


# ------------------------------- parameter init -------------------------------

def init_params(key, n_vocab, n_embd, n_token, n_layers):
    keys = jax.random.split(key, 1 + n_layers)
    params = {
        "tok_emb": jax.random.normal(keys[0], (n_vocab, n_embd), jnp.float32) * 0.02,
        "pos_emb": jnp.zeros((n_token, n_embd), jnp.float32),   # torch.zeros in module
        "gF": jnp.ones((1, n_embd), jnp.float32),
        "bF": jnp.zeros((1, n_embd), jnp.float32),
    }
    layers = []
    for i in range(n_layers):
        lk = jax.random.split(keys[1 + i], 6)
        layers.append(dict(
            g1=jnp.ones((1, n_embd), jnp.float32),
            b1=jnp.zeros((1, n_embd), jnp.float32),
            wqkv=jax.random.normal(lk[0], (n_embd, 3 * n_embd), jnp.float32) * 0.02,
            bqkv=jax.random.normal(lk[1], (1, 3 * n_embd), jnp.float32) * 0.02,
            wo=jax.random.normal(lk[2], (n_embd, n_embd), jnp.float32) * 0.02,
            bo=jnp.zeros((1, n_embd), jnp.float32),
            g2=jnp.ones((1, n_embd), jnp.float32),
            b2=jnp.zeros((1, n_embd), jnp.float32),
            w1=jax.random.normal(lk[3], (n_embd, 4 * n_embd), jnp.float32) * 0.02,
            bb1=jax.random.normal(lk[4], (1, 4 * n_embd), jnp.float32) * 0.02,
            w2=jax.random.normal(lk[5], (4 * n_embd, n_embd), jnp.float32) * 0.02,
            bb2=jnp.zeros((1, n_embd), jnp.float32),
        ))
    params["layers"] = layers
    return params


# ------------------------------- pure-JAX f32 reference -------------------------------

def _ref_layernorm(x, g, b, eps=1e-5):
    mu = jnp.mean(x, axis=-1, keepdims=True)
    var = jnp.mean((x - mu) ** 2, axis=-1, keepdims=True)
    return (x - mu) / jnp.sqrt(var + eps) * g + b


def clip_reference(tokens, params, n_head):
    tokens = tokens.astype(jnp.int32)
    x = params["tok_emb"][tokens] + params["pos_emb"][None]
    B, T, D = x.shape
    dh = D // n_head
    causal = jnp.triu(jnp.ones((T, T), dtype=bool), k=1)
    for lp in params["layers"]:
        res = x
        xn = _ref_layernorm(x, lp["g1"], lp["b1"])
        qkv = xn @ lp["wqkv"] + lp["bqkv"]
        q, k, v = jnp.split(qkv, 3, axis=-1)
        q = q.reshape(B, T, n_head, dh).transpose(0, 2, 1, 3)
        k = k.reshape(B, T, n_head, dh).transpose(0, 2, 1, 3)
        v = v.reshape(B, T, n_head, dh).transpose(0, 2, 1, 3)
        s = jnp.einsum("bhqd,bhkd->bhqk", q, k) / math.sqrt(dh)
        s = jnp.where(causal[None, None], -jnp.inf, s)
        p = jax.nn.softmax(s, axis=-1)
        o = jnp.einsum("bhqk,bhkd->bhqd", p, v).transpose(0, 2, 1, 3).reshape(B, T, D)
        x = o @ lp["wo"] + lp["bo"] + res
        res = x
        xn = _ref_layernorm(x, lp["g2"], lp["b2"])
        h1 = xn @ lp["w1"] + lp["bb1"]
        h1 = h1 * jax.nn.sigmoid(1.702 * h1)
        x = h1 @ lp["w2"] + lp["bb2"] + res
    return _ref_layernorm(x, params["gF"], params["bF"])


# ------------------------------- main -------------------------------

if __name__ == "__main__":
    # Small, module-consistent shapes: batch=2, seq(n_token)=16, embed=128,
    # heads=4 (d_head=32), layers=2, vocab=512.
    B, T, D, H, L, V = 2, 16, 128, 4, 2, 512

    key = jax.random.PRNGKey(0)
    pkey, tkey = jax.random.split(key)
    params = init_params(pkey, V, D, T, L)
    tokens = jax.random.randint(tkey, (B, T), 0, V, dtype=jnp.int32)

    packed = pack_params(params)                         # one-time stack + bf16 cast
    out = clip_forward_jit(tokens, packed, H)
    out = jax.block_until_ready(out)

    ref = clip_reference(tokens, params, H)
    # Tolerance reflects bf16 MXU operands (f32 accumulation) + approx reciprocal vs the
    # pure-f32 reference; structural errors would be O(1) after the final LayerNorm.
    np.testing.assert_allclose(np.asarray(out), np.asarray(ref), rtol=2e-2, atol=2e-2)

    print("KERNEL_OK")
</pallas_src>

<mosaic_0001>
module attributes {stable_mosaic.version = 11 : i64} {
  func.func @clip_layers_kernel(%arg0: i32, %arg1: i32, %arg2: memref<1x16x128xf32, #tpu.memory_space<vmem>>, %arg3: memref<1x1x128xf32, #tpu.memory_space<vmem>>, %arg4: memref<1x1x128xf32, #tpu.memory_space<vmem>>, %arg5: memref<1x128x384xbf16, #tpu.memory_space<vmem>>, %arg6: memref<1x1x384xf32, #tpu.memory_space<vmem>>, %arg7: memref<1x128x128xbf16, #tpu.memory_space<vmem>>, %arg8: memref<1x1x128xf32, #tpu.memory_space<vmem>>, %arg9: memref<1x1x128xf32, #tpu.memory_space<vmem>>, %arg10: memref<1x1x128xf32, #tpu.memory_space<vmem>>, %arg11: memref<1x128x512xbf16, #tpu.memory_space<vmem>>, %arg12: memref<1x1x512xf32, #tpu.memory_space<vmem>>, %arg13: memref<1x512x128xbf16, #tpu.memory_space<vmem>>, %arg14: memref<1x1x128xf32, #tpu.memory_space<vmem>>, %arg15: memref<1x128xf32, #tpu.memory_space<vmem>>, %arg16: memref<1x128xf32, #tpu.memory_space<vmem>>, %arg17: memref<1x16x128xf32, #tpu.memory_space<vmem>>, %arg18: memref<16x128xf32, #tpu.memory_space<vmem>>, %arg19: memref<16x128xbf16, #tpu.memory_space<vmem>>, %arg20: memref<16x128xbf16, #tpu.memory_space<vmem>>, %arg21: memref<16x128xbf16, #tpu.memory_space<vmem>>, %arg22: memref<16x128xbf16, #tpu.memory_space<vmem>>) attributes {dimension_semantics = [#tpu.dimension_semantics<parallel>, #tpu.dimension_semantics<arbitrary>], iteration_bounds = array<i64: 2, 2>, scalar_prefetch = 0 : i64, scratch_operands = 5 : i64, tpu.core_type = #tpu.core_type<tc>, window_params = [{transform_indices = @transform_0, window_bounds = array<i64: 1, 16, 128>}, {transform_indices = @transform_1, window_bounds = array<i64: 1, 1, 128>}, {transform_indices = @transform_2, window_bounds = array<i64: 1, 1, 128>}, {transform_indices = @transform_3, window_bounds = array<i64: 1, 128, 384>}, {transform_indices = @transform_4, window_bounds = array<i64: 1, 1, 384>}, {transform_indices = @transform_5, window_bounds = array<i64: 1, 128, 128>}, {transform_indices = @transform_6, window_bounds = array<i64: 1, 1, 128>}, {transform_indices = @transform_7, window_bounds = array<i64: 1, 1, 128>}, {transform_indices = @transform_8, window_bounds = array<i64: 1, 1, 128>}, {transform_indices = @transform_9, window_bounds = array<i64: 1, 128, 512>}, {transform_indices = @transform_10, window_bounds = array<i64: 1, 1, 512>}, {transform_indices = @transform_11, window_bounds = array<i64: 1, 512, 128>}, {transform_indices = @transform_12, window_bounds = array<i64: 1, 1, 128>}, {pipeline_mode = #tpu.pipeline_mode<synchronous>, transform_indices = @transform_13, window_bounds = array<i64: 1, 128>}, {pipeline_mode = #tpu.pipeline_mode<synchronous>, transform_indices = @transform_14, window_bounds = array<i64: 1, 128>}, {transform_indices = @transform_15, window_bounds = array<i64: 1, 16, 128>}]} {
    %c0_i32 = arith.constant 0 : i32
    %0 = arith.cmpi eq, %arg1, %c0_i32 : i32
    %1 = arith.extui %0 : i1 to i32
    %c0_i32_0 = arith.constant 0 : i32
    %2 = arith.cmpi ne, %1, %c0_i32_0 : i32
    scf.if %2 {
      %c0_91 = arith.constant 0 : index
      %c0_92 = arith.constant 0 : index
      %c0_93 = arith.constant 0 : index
      %203 = vector.load %arg2[%c0_91, %c0_92, %c0_93] : memref<1x16x128xf32, #tpu.memory_space<vmem>>, vector<1x16x128xf32>
      %204 = vector.shape_cast %203 : vector<1x16x128xf32> to vector<16x128xf32>
      %c0_94 = arith.constant 0 : index
      %c0_95 = arith.constant 0 : index
      %205 = vector.load %arg18[%c0_94, %c0_95] : memref<16x128xf32, #tpu.memory_space<vmem>>, vector<16x128xf32>
      tpu.vector_store %arg18[%c0_94, %c0_95], %204 {strides = array<i32>} : memref<16x128xf32, #tpu.memory_space<vmem>>, vector<16x128xf32>,
    } else {
    }
    %c0 = arith.constant 0 : index
    %c0_1 = arith.constant 0 : index
    %3 = vector.load %arg18[%c0, %c0_1] : memref<16x128xf32, #tpu.memory_space<vmem>>, vector<16x128xf32>
    %c0_2 = arith.constant 0 : index
    %c0_3 = arith.constant 0 : index
    %c0_4 = arith.constant 0 : index
    %4 = vector.load %arg3[%c0_2, %c0_3, %c0_4] : memref<1x1x128xf32, #tpu.memory_space<vmem>>, vector<1x1x128xf32>
    %5 = vector.shape_cast %4 : vector<1x1x128xf32> to vector<1x128xf32>
    %c0_5 = arith.constant 0 : index
    %c0_6 = arith.constant 0 : index
    %c0_7 = arith.constant 0 : index
    %6 = vector.load %arg4[%c0_5, %c0_6, %c0_7] : memref<1x1x128xf32, #tpu.memory_space<vmem>>, vector<1x1x128xf32>
    %7 = vector.shape_cast %6 : vector<1x1x128xf32> to vector<1x128xf32>
    %cst = arith.constant dense<0.000000e+00> : vector<16xf32>
    %8 = vector.multi_reduction <add>, %3, %cst [1] : vector<16x128xf32> to vector<16xf32>
    %9 = vector.shape_cast %8 : vector<16xf32> to vector<16x1xf32>
    %cst_8 = arith.constant 1.280000e+02 : f32
    %10 = vector.broadcast %cst_8 : f32 to vector<16x1xf32>
    %11 = arith.divf %9, %10 : vector<16x1xf32>
    %12 = vector.broadcast %11 : vector<16x1xf32> to vector<16x128xf32>
    %13 = arith.subf %3, %12 : vector<16x128xf32>
    %14 = arith.mulf %13, %13 : vector<16x128xf32>
    %cst_9 = arith.constant dense<0.000000e+00> : vector<16xf32>
    %15 = vector.multi_reduction <add>, %14, %cst_9 [1] : vector<16x128xf32> to vector<16xf32>
    %16 = vector.shape_cast %15 : vector<16xf32> to vector<16x1xf32>
    %cst_10 = arith.constant 1.280000e+02 : f32
    %17 = vector.broadcast %cst_10 : f32 to vector<16x1xf32>
    %18 = arith.divf %16, %17 : vector<16x1xf32>
    %19 = vector.broadcast %11 : vector<16x1xf32> to vector<16x128xf32>
    %20 = arith.subf %3, %19 : vector<16x128xf32>
    %cst_11 = arith.constant 9.99999974E-6 : f32
    %21 = vector.broadcast %cst_11 : f32 to vector<16x1xf32>
    %22 = arith.addf %18, %21 : vector<16x1xf32>
    %23 = math.rsqrt %22 : vector<16x1xf32>
    %24 = vector.broadcast %23 : vector<16x1xf32> to vector<16x128xf32>
    %25 = arith.mulf %20, %24 : vector<16x128xf32>
    %26 = vector.broadcast %5 : vector<1x128xf32> to vector<16x128xf32>
    %27 = arith.mulf %25, %26 : vector<16x128xf32>
    %28 = vector.broadcast %7 : vector<1x128xf32> to vector<16x128xf32>
    %29 = arith.addf %27, %28 : vector<16x128xf32>
    %30 = arith.truncf %29 : vector<16x128xf32> to vector<16x128xbf16>
    %c0_12 = arith.constant 0 : index
    %c0_13 = arith.constant 0 : index
    %c0_14 = arith.constant 0 : index
    %31 = vector.load %arg5[%c0_12, %c0_13, %c0_14] : memref<1x128x384xbf16, #tpu.memory_space<vmem>>, vector<1x128x384xbf16>
    %32 = vector.shape_cast %31 : vector<1x128x384xbf16> to vector<128x384xbf16>
    %cst_15 = arith.constant dense<0.000000e+00> : vector<16x384xf32>
    %33 = tpu.matmul %30, %32, %cst_15 {dimension_numbers = #tpu.dot_dimension_numbers<[1], [0], [0], [1], [0, 0, 1, 1], [], []>} : vector<16x128xbf16>, vector<128x384xbf16>, vector<16x384xf32> -> vector<16x384xf32>
    %c0_16 = arith.constant 0 : index
    %c0_17 = arith.constant 0 : index
    %c0_18 = arith.constant 0 : index
    %34 = vector.load %arg6[%c0_16, %c0_17, %c0_18] : memref<1x1x384xf32, #tpu.memory_space<vmem>>, vector<1x1x384xf32>
    %35 = vector.shape_cast %34 : vector<1x1x384xf32> to vector<1x384xf32>
    %36 = vector.broadcast %35 : vector<1x384xf32> to vector<16x384xf32>
    %37 = arith.addf %33, %36 : vector<16x384xf32>
    %38 = vector.extract_strided_slice %37 {offsets = [0, 0], sizes = [16, 128], strides = [1, 1]} : vector<16x384xf32> to vector<16x128xf32>
    %cst_19 = arith.constant 0.176776692 : f32
    %39 = vector.broadcast %cst_19 : f32 to vector<16x128xf32>
    %40 = arith.mulf %38, %39 : vector<16x128xf32>
    %41 = arith.truncf %40 : vector<16x128xf32> to vector<16x128xbf16>
    %c0_20 = arith.constant 0 : index
    %c0_21 = arith.constant 0 : index
    %42 = vector.load %arg20[%c0_20, %c0_21] : memref<16x128xbf16, #tpu.memory_space<vmem>>, vector<16x128xbf16>
    tpu.vector_store %arg20[%c0_20, %c0_21], %41 {strides = array<i32>} : memref<16x128xbf16, #tpu.memory_space<vmem>>, vector<16x128xbf16>,
    %43 = vector.extract_strided_slice %37 {offsets = [0, 128], sizes = [16, 128], strides = [1, 1]} : vector<16x384xf32> to vector<16x128xf32>
    %44 = arith.truncf %43 : vector<16x128xf32> to vector<16x128xbf16>
    %c0_22 = arith.constant 0 : index
    %c0_23 = arith.constant 0 : index
    %45 = vector.load %arg21[%c0_22, %c0_23] : memref<16x128xbf16, #tpu.memory_space<vmem>>, vector<16x128xbf16>
    tpu.vector_store %arg21[%c0_22, %c0_23], %44 {strides = array<i32>} : memref<16x128xbf16, #tpu.memory_space<vmem>>, vector<16x128xbf16>,
    %46 = vector.extract_strided_slice %37 {offsets = [0, 256], sizes = [16, 128], strides = [1, 1]} : vector<16x384xf32> to vector<16x128xf32>
    %47 = arith.truncf %46 : vector<16x128xf32> to vector<16x128xbf16>
    %c0_24 = arith.constant 0 : index
    %c0_25 = arith.constant 0 : index
    %48 = vector.load %arg22[%c0_24, %c0_25] : memref<16x128xbf16, #tpu.memory_space<vmem>>, vector<16x128xbf16>
    tpu.vector_store %arg22[%c0_24, %c0_25], %47 {strides = array<i32>} : memref<16x128xbf16, #tpu.memory_space<vmem>>, vector<16x128xbf16>,
    %49 = tpu.iota {dimensions = array<i32: 0>} : vector<16x16xi32>
    %50 = tpu.iota {dimensions = array<i32: 1>} : vector<16x16xi32>
    %51 = arith.cmpi sgt, %50, %49 : vector<16x16xi32>
    %c0_i32_26 = arith.constant 0 : i32
    %c128_i32 = arith.constant 128 : i32
    %52 = arith.muli %c0_i32_26, %c128_i32 : i32
    %53 = tpu.assume_multiple %52, 128 : i32
    %c0_27 = arith.constant 0 : index
    %54 = arith.index_cast %53 : i32 to index
    %55 = vector.load %arg20[%c0_27, %54] : memref<16x128xbf16, #tpu.memory_space<vmem>>, vector<16x128xbf16>
    %c0_28 = arith.constant 0 : index
    %56 = arith.index_cast %53 : i32 to index
    %57 = vector.load %arg21[%c0_28, %56] : memref<16x128xbf16, #tpu.memory_space<vmem>>, vector<16x128xbf16>
    %c0_29 = arith.constant 0 : index
    %58 = arith.index_cast %53 : i32 to index
    %59 = vector.load %arg22[%c0_29, %58] : memref<16x128xbf16, #tpu.memory_space<vmem>>, vector<16x128xbf16>
    %60 = vector.extract_strided_slice %55 {offsets = [0, 0], sizes = [16, 32], strides = [1, 1]} : vector<16x128xbf16> to vector<16x32xbf16>
    %61 = vector.extract_strided_slice %57 {offsets = [0, 0], sizes = [16, 32], strides = [1, 1]} : vector<16x128xbf16> to vector<16x32xbf16>
    %cst_30 = arith.constant dense<0.000000e+00> : vector<16x16xf32>
    %62 = tpu.matmul %60, %61, %cst_30 {dimension_numbers = #tpu.dot_dimension_numbers<[1], [1], [0], [0], [0, 0, 1, 0], [], []>} : vector<16x32xbf16>, vector<16x32xbf16>, vector<16x16xf32> -> vector<16x16xf32>
    %cst_31 = arith.constant -1.000000e+30 : f32
    %63 = vector.broadcast %cst_31 : f32 to vector<16x16xf32>
    %64 = arith.select %51, %63, %62 : vector<16x16xi1>, vector<16x16xf32>
    %cst_32 = arith.constant dense<0xFF800000> : vector<16xf32>
    %65 = vector.multi_reduction <maximumf>, %64, %cst_32 [1] : vector<16x16xf32> to vector<16xf32>
    %66 = vector.shape_cast %65 : vector<16xf32> to vector<16x1xf32>
    %67 = vector.broadcast %66 : vector<16x1xf32> to vector<16x16xf32>
    %68 = arith.subf %64, %67 : vector<16x16xf32>
    %69 = math.exp %68 : vector<16x16xf32>
    %cst_33 = arith.constant dense<0.000000e+00> : vector<16xf32>
    %70 = vector.multi_reduction <add>, %69, %cst_33 [1] : vector<16x16xf32> to vector<16xf32>
    %71 = vector.shape_cast %70 : vector<16xf32> to vector<16x1xf32>
    %72 = tpu.reciprocal %71 {approx = true} : vector<16x1xf32> -> vector<16x1xf32>
    %73 = arith.truncf %69 : vector<16x16xf32> to vector<16x16xbf16>
    %74 = vector.extract_strided_slice %59 {offsets = [0, 0], sizes = [16, 32], strides = [1, 1]} : vector<16x128xbf16> to vector<16x32xbf16>
    %cst_34 = arith.constant dense<0.000000e+00> : vector<16x32xf32>
    %75 = tpu.matmul %73, %74, %cst_34 {dimension_numbers = #tpu.dot_dimension_numbers<[1], [0], [0], [1], [0, 0, 1, 1], [], []>} : vector<16x16xbf16>, vector<16x32xbf16>, vector<16x32xf32> -> vector<16x32xf32>
    %76 = vector.broadcast %72 : vector<16x1xf32> to vector<16x32xf32>
    %77 = arith.mulf %75, %76 : vector<16x32xf32>
    %78 = arith.truncf %77 : vector<16x32xf32> to vector<16x32xbf16>
    %79 = vector.extract_strided_slice %55 {offsets = [0, 32], sizes = [16, 32], strides = [1, 1]} : vector<16x128xbf16> to vector<16x32xbf16>
    %80 = vector.extract_strided_slice %57 {offsets = [0, 32], sizes = [16, 32], strides = [1, 1]} : vector<16x128xbf16> to vector<16x32xbf16>
    %cst_35 = arith.constant dense<0.000000e+00> : vector<16x16xf32>
    %81 = tpu.matmul %79, %80, %cst_35 {dimension_numbers = #tpu.dot_dimension_numbers<[1], [1], [0], [0], [0, 0, 1, 0], [], []>} : vector<16x32xbf16>, vector<16x32xbf16>, vector<16x16xf32> -> vector<16x16xf32>
    %cst_36 = arith.constant -1.000000e+30 : f32
    %82 = vector.broadcast %cst_36 : f32 to vector<16x16xf32>
    %83 = arith.select %51, %82, %81 : vector<16x16xi1>, vector<16x16xf32>
    %cst_37 = arith.constant dense<0xFF800000> : vector<16xf32>
    %84 = vector.multi_reduction <maximumf>, %83, %cst_37 [1] : vector<16x16xf32> to vector<16xf32>
    %85 = vector.shape_cast %84 : vector<16xf32> to vector<16x1xf32>
    %86 = vector.broadcast %85 : vector<16x1xf32> to vector<16x16xf32>
    %87 = arith.subf %83, %86 : vector<16x16xf32>
    %88 = math.exp %87 : vector<16x16xf32>
    %cst_38 = arith.constant dense<0.000000e+00> : vector<16xf32>
    %89 = vector.multi_reduction <add>, %88, %cst_38 [1] : vector<16x16xf32> to vector<16xf32>
    %90 = vector.shape_cast %89 : vector<16xf32> to vector<16x1xf32>
    %91 = tpu.reciprocal %90 {approx = true} : vector<16x1xf32> -> vector<16x1xf32>
    %92 = arith.truncf %88 : vector<16x16xf32> to vector<16x16xbf16>
    %93 = vector.extract_strided_slice %59 {offsets = [0, 32], sizes = [16, 32], strides = [1, 1]} : vector<16x128xbf16> to vector<16x32xbf16>
    %cst_39 = arith.constant dense<0.000000e+00> : vector<16x32xf32>
    %94 = tpu.matmul %92, %93, %cst_39 {dimension_numbers = #tpu.dot_dimension_numbers<[1], [0], [0], [1], [0, 0, 1, 1], [], []>} : vector<16x16xbf16>, vector<16x32xbf16>, vector<16x32xf32> -> vector<16x32xf32>
    %95 = vector.broadcast %91 : vector<16x1xf32> to vector<16x32xf32>
    %96 = arith.mulf %94, %95 : vector<16x32xf32>
    %97 = arith.truncf %96 : vector<16x32xf32> to vector<16x32xbf16>
    %98 = vector.extract_strided_slice %55 {offsets = [0, 64], sizes = [16, 32], strides = [1, 1]} : vector<16x128xbf16> to vector<16x32xbf16>
    %99 = vector.extract_strided_slice %57 {offsets = [0, 64], sizes = [16, 32], strides = [1, 1]} : vector<16x128xbf16> to vector<16x32xbf16>
    %cst_40 = arith.constant dense<0.000000e+00> : vector<16x16xf32>
    %100 = tpu.matmul %98, %99, %cst_40 {dimension_numbers = #tpu.dot_dimension_numbers<[1], [1], [0], [0], [0, 0, 1, 0], [], []>} : vector<16x32xbf16>, vector<16x32xbf16>, vector<16x16xf32> -> vector<16x16xf32>
    %cst_41 = arith.constant -1.000000e+30 : f32
    %101 = vector.broadcast %cst_41 : f32 to vector<16x16xf32>
    %102 = arith.select %51, %101, %100 : vector<16x16xi1>, vector<16x16xf32>
    %cst_42 = arith.constant dense<0xFF800000> : vector<16xf32>
    %103 = vector.multi_reduction <maximumf>, %102, %cst_42 [1] : vector<16x16xf32> to vector<16xf32>
    %104 = vector.shape_cast %103 : vector<16xf32> to vector<16x1xf32>
    %105 = vector.broadcast %104 : vector<16x1xf32> to vector<16x16xf32>
    %106 = arith.subf %102, %105 : vector<16x16xf32>
    %107 = math.exp %106 : vector<16x16xf32>
    %cst_43 = arith.constant dense<0.000000e+00> : vector<16xf32>
    %108 = vector.multi_reduction <add>, %107, %cst_43 [1] : vector<16x16xf32> to vector<16xf32>
    %109 = vector.shape_cast %108 : vector<16xf32> to vector<16x1xf32>
    %110 = tpu.reciprocal %109 {approx = true} : vector<16x1xf32> -> vector<16x1xf32>
    %111 = arith.truncf %107 : vector<16x16xf32> to vector<16x16xbf16>
    %112 = vector.extract_strided_slice %59 {offsets = [0, 64], sizes = [16, 32], strides = [1, 1]} : vector<16x128xbf16> to vector<16x32xbf16>
    %cst_44 = arith.constant dense<0.000000e+00> : vector<16x32xf32>
    %113 = tpu.matmul %111, %112, %cst_44 {dimension_numbers = #tpu.dot_dimension_numbers<[1], [0], [0], [1], [0, 0, 1, 1], [], []>} : vector<16x16xbf16>, vector<16x32xbf16>, vector<16x32xf32> -> vector<16x32xf32>
    %114 = vector.broadcast %110 : vector<16x1xf32> to vector<16x32xf32>
    %115 = arith.mulf %113, %114 : vector<16x32xf32>
    %116 = arith.truncf %115 : vector<16x32xf32> to vector<16x32xbf16>
    %117 = vector.extract_strided_slice %55 {offsets = [0, 96], sizes = [16, 32], strides = [1, 1]} : vector<16x128xbf16> to vector<16x32xbf16>
    %118 = vector.extract_strided_slice %57 {offsets = [0, 96], sizes = [16, 32], strides = [1, 1]} : vector<16x128xbf16> to vector<16x32xbf16>
    %cst_45 = arith.constant dense<0.000000e+00> : vector<16x16xf32>
    %119 = tpu.matmul %117, %118, %cst_45 {dimension_numbers = #tpu.dot_dimension_numbers<[1], [1], [0], [0], [0, 0, 1, 0], [], []>} : vector<16x32xbf16>, vector<16x32xbf16>, vector<16x16xf32> -> vector<16x16xf32>
    %cst_46 = arith.constant -1.000000e+30 : f32
    %120 = vector.broadcast %cst_46 : f32 to vector<16x16xf32>
    %121 = arith.select %51, %120, %119 : vector<16x16xi1>, vector<16x16xf32>
    %cst_47 = arith.constant dense<0xFF800000> : vector<16xf32>
    %122 = vector.multi_reduction <maximumf>, %121, %cst_47 [1] : vector<16x16xf32> to vector<16xf32>
    %123 = vector.shape_cast %122 : vector<16xf32> to vector<16x1xf32>
    %124 = vector.broadcast %123 : vector<16x1xf32> to vector<16x16xf32>
    %125 = arith.subf %121, %124 : vector<16x16xf32>
    %126 = math.exp %125 : vector<16x16xf32>
    %cst_48 = arith.constant dense<0.000000e+00> : vector<16xf32>
    %127 = vector.multi_reduction <add>, %126, %cst_48 [1] : vector<16x16xf32> to vector<16xf32>
    %128 = vector.shape_cast %127 : vector<16xf32> to vector<16x1xf32>
    %129 = tpu.reciprocal %128 {approx = true} : vector<16x1xf32> -> vector<16x1xf32>
    %130 = arith.truncf %126 : vector<16x16xf32> to vector<16x16xbf16>
    %131 = vector.extract_strided_slice %59 {offsets = [0, 96], sizes = [16, 32], strides = [1, 1]} : vector<16x128xbf16> to vector<16x32xbf16>
    %cst_49 = arith.constant dense<0.000000e+00> : vector<16x32xf32>
    %132 = tpu.matmul %130, %131, %cst_49 {dimension_numbers = #tpu.dot_dimension_numbers<[1], [0], [0], [1], [0, 0, 1, 1], [], []>} : vector<16x16xbf16>, vector<16x32xbf16>, vector<16x32xf32> -> vector<16x32xf32>
    %133 = vector.broadcast %129 : vector<16x1xf32> to vector<16x32xf32>
    %134 = arith.mulf %132, %133 : vector<16x32xf32>
    %135 = arith.truncf %134 : vector<16x32xf32> to vector<16x32xbf16>
    %136 = tpu.concatenate %78, %97, %116, %135 in 1 : vector<16x32xbf16>, vector<16x32xbf16>, vector<16x32xbf16>, vector<16x32xbf16> -> vector<16x128xbf16>
    %c0_50 = arith.constant 0 : index
    %137 = arith.index_cast %53 : i32 to index
    %138 = vector.load %arg19[%c0_50, %137] : memref<16x128xbf16, #tpu.memory_space<vmem>>, vector<16x128xbf16>
    tpu.vector_store %arg19[%c0_50, %137], %136 {strides = array<i32>} : memref<16x128xbf16, #tpu.memory_space<vmem>>, vector<16x128xbf16>,
    %c1_i32 = arith.constant 1 : i32
    %c0_51 = arith.constant 0 : index
    %c0_52 = arith.constant 0 : index
    %139 = vector.load %arg19[%c0_51, %c0_52] : memref<16x128xbf16, #tpu.memory_space<vmem>>, vector<16x128xbf16>
    %c0_53 = arith.constant 0 : index
    %c0_54 = arith.constant 0 : index
    %c0_55 = arith.constant 0 : index
    %140 = vector.load %arg7[%c0_53, %c0_54, %c0_55] : memref<1x128x128xbf16, #tpu.memory_space<vmem>>, vector<1x128x128xbf16>
    %141 = vector.shape_cast %140 : vector<1x128x128xbf16> to vector<128x128xbf16>
    %cst_56 = arith.constant dense<0.000000e+00> : vector<16x128xf32>
    %142 = tpu.matmul %139, %141, %cst_56 {dimension_numbers = #tpu.dot_dimension_numbers<[1], [0], [0], [1], [0, 0, 1, 1], [], []>} : vector<16x128xbf16>, vector<128x128xbf16>, vector<16x128xf32> -> vector<16x128xf32>
    %c0_57 = arith.constant 0 : index
    %c0_58 = arith.constant 0 : index
    %c0_59 = arith.constant 0 : index
    %143 = vector.load %arg8[%c0_57, %c0_58, %c0_59] : memref<1x1x128xf32, #tpu.memory_space<vmem>>, vector<1x1x128xf32>
    %144 = vector.shape_cast %143 : vector<1x1x128xf32> to vector<1x128xf32>
    %145 = vector.broadcast %144 : vector<1x128xf32> to vector<16x128xf32>
    %146 = arith.addf %142, %145 : vector<16x128xf32>
    %147 = arith.addf %146, %3 : vector<16x128xf32>
    %c0_60 = arith.constant 0 : index
    %c0_61 = arith.constant 0 : index
    %c0_62 = arith.constant 0 : index
    %148 = vector.load %arg9[%c0_60, %c0_61, %c0_62] : memref<1x1x128xf32, #tpu.memory_space<vmem>>, vector<1x1x128xf32>
    %149 = vector.shape_cast %148 : vector<1x1x128xf32> to vector<1x128xf32>
    %c0_63 = arith.constant 0 : index
    %c0_64 = arith.constant 0 : index
    %c0_65 = arith.constant 0 : index
    %150 = vector.load %arg10[%c0_63, %c0_64, %c0_65] : memref<1x1x128xf32, #tpu.memory_space<vmem>>, vector<1x1x128xf32>
    %151 = vector.shape_cast %150 : vector<1x1x128xf32> to vector<1x128xf32>
    %cst_66 = arith.constant dense<0.000000e+00> : vector<16xf32>
    %152 = vector.multi_reduction <add>, %147, %cst_66 [1] : vector<16x128xf32> to vector<16xf32>
    %153 = vector.shape_cast %152 : vector<16xf32> to vector<16x1xf32>
    %cst_67 = arith.constant 1.280000e+02 : f32
    %154 = vector.broadcast %cst_67 : f32 to vector<16x1xf32>
    %155 = arith.divf %153, %154 : vector<16x1xf32>
    %156 = vector.broadcast %155 : vector<16x1xf32> to vector<16x128xf32>
    %157 = arith.subf %147, %156 : vector<16x128xf32>
    %158 = arith.mulf %157, %157 : vector<16x128xf32>
    %cst_68 = arith.constant dense<0.000000e+00> : vector<16xf32>
    %159 = vector.multi_reduction <add>, %158, %cst_68 [1] : vector<16x128xf32> to vector<16xf32>
    %160 = vector.shape_cast %159 : vector<16xf32> to vector<16x1xf32>
    %cst_69 = arith.constant 1.280000e+02 : f32
    %161 = vector.broadcast %cst_69 : f32 to vector<16x1xf32>
    %162 = arith.divf %160, %161 : vector<16x1xf32>
    %163 = vector.broadcast %155 : vector<16x1xf32> to vector<16x128xf32>
    %164 = arith.subf %147, %163 : vector<16x128xf32>
    %cst_70 = arith.constant 9.99999974E-6 : f32
    %165 = vector.broadcast %cst_70 : f32 to vector<16x1xf32>
    %166 = arith.addf %162, %165 : vector<16x1xf32>
    %167 = math.rsqrt %166 : vector<16x1xf32>
    %168 = vector.broadcast %167 : vector<16x1xf32> to vector<16x128xf32>
    %169 = arith.mulf %164, %168 : vector<16x128xf32>
    %170 = vector.broadcast %149 : vector<1x128xf32> to vector<16x128xf32>
    %171 = arith.mulf %169, %170 : vector<16x128xf32>
    %172 = vector.broadcast %151 : vector<1x128xf32> to vector<16x128xf32>
    %173 = arith.addf %171, %172 : vector<16x128xf32>
    %174 = arith.truncf %173 : vector<16x128xf32> to vector<16x128xbf16>
    %c0_71 = arith.constant 0 : index
    %c0_72 = arith.constant 0 : index
    %c0_73 = arith.constant 0 : index
    %175 = vector.load %arg11[%c0_71, %c0_72, %c0_73] : memref<1x128x512xbf16, #tpu.memory_space<vmem>>, vector<1x128x512xbf16>
    %176 = vector.shape_cast %175 : vector<1x128x512xbf16> to vector<128x512xbf16>
    %cst_74 = arith.constant dense<0.000000e+00> : vector<16x512xf32>
    %177 = tpu.matmul %174, %176, %cst_74 {dimension_numbers = #tpu.dot_dimension_numbers<[1], [0], [0], [1], [0, 0, 1, 1], [], []>} : vector<16x128xbf16>, vector<128x512xbf16>, vector<16x512xf32> -> vector<16x512xf32>
    %c0_75 = arith.constant 0 : index
    %c0_76 = arith.constant 0 : index
    %c0_77 = arith.constant 0 : index
    %178 = vector.load %arg12[%c0_75, %c0_76, %c0_77] : memref<1x1x512xf32, #tpu.memory_space<vmem>>, vector<1x1x512xf32>
    %179 = vector.shape_cast %178 : vector<1x1x512xf32> to vector<1x512xf32>
    %180 = vector.broadcast %179 : vector<1x512xf32> to vector<16x512xf32>
    %181 = arith.addf %177, %180 : vector<16x512xf32>
    %cst_78 = arith.constant 1.702000e+00 : f32
    %182 = vector.broadcast %cst_78 : f32 to vector<16x512xf32>
    %183 = arith.mulf %182, %181 : vector<16x512xf32>
    %184 = arith.negf %183 : vector<16x512xf32>
    %185 = math.exp %184 : vector<16x512xf32>
    %cst_79 = arith.constant 1.000000e+00 : f32
    %186 = vector.broadcast %cst_79 : f32 to vector<16x512xf32>
    %187 = arith.addf %186, %185 : vector<16x512xf32>
    %188 = arith.divf %186, %187 : vector<16x512xf32>
    %189 = arith.mulf %181, %188 : vector<16x512xf32>
    %190 = arith.truncf %189 : vector<16x512xf32> to vector<16x512xbf16>
    %c0_80 = arith.constant 0 : index
    %c0_81 = arith.constant 0 : index
    %c0_82 = arith.constant 0 : index
    %191 = vector.load %arg13[%c0_80, %c0_81, %c0_82] : memref<1x512x128xbf16, #tpu.memory_space<vmem>>, vector<1x512x128xbf16>
    %192 = vector.shape_cast %191 : vector<1x512x128xbf16> to vector<512x128xbf16>
    %cst_83 = arith.constant dense<0.000000e+00> : vector<16x128xf32>
    %193 = tpu.matmul %190, %192, %cst_83 {dimension_numbers = #tpu.dot_dimension_numbers<[1], [0], [0], [1], [0, 0, 1, 1], [], []>} : vector<16x512xbf16>, vector<512x128xbf16>, vector<16x128xf32> -> vector<16x128xf32>
    %c0_84 = arith.constant 0 : index
    %c0_85 = arith.constant 0 : index
    %c0_86 = arith.constant 0 : index
    %194 = vector.load %arg14[%c0_84, %c0_85, %c0_86] : memref<1x1x128xf32, #tpu.memory_space<vmem>>, vector<1x1x128xf32>
    %195 = vector.shape_cast %194 : vector<1x1x128xf32> to vector<1x128xf32>
    %196 = vector.broadcast %195 : vector<1x128xf32> to vector<16x128xf32>
    %197 = arith.addf %193, %196 : vector<16x128xf32>
    %198 = arith.addf %197, %147 : vector<16x128xf32>
    %c0_87 = arith.constant 0 : index
    %c0_88 = arith.constant 0 : index
    %199 = vector.load %arg18[%c0_87, %c0_88] : memref<16x128xf32, #tpu.memory_space<vmem>>, vector<16x128xf32>
    tpu.vector_store %arg18[%c0_87, %c0_88], %198 {strides = array<i32>} : memref<16x128xf32, #tpu.memory_space<vmem>>, vector<16x128xf32>,
    %c1_i32_89 = arith.constant 1 : i32
    %200 = arith.cmpi eq, %arg1, %c1_i32_89 : i32
    %201 = arith.extui %200 : i1 to i32
    %c0_i32_90 = arith.constant 0 : i32
    %202 = arith.cmpi ne, %201, %c0_i32_90 : i32
    scf.if %202 {
      %c0_91 = arith.constant 0 : index
      %c0_92 = arith.constant 0 : index
      %203 = vector.load %arg15[%c0_91, %c0_92] : memref<1x128xf32, #tpu.memory_space<vmem>>, vector<1x128xf32>
      %c0_93 = arith.constant 0 : index
      %c0_94 = arith.constant 0 : index
      %204 = vector.load %arg16[%c0_93, %c0_94] : memref<1x128xf32, #tpu.memory_space<vmem>>, vector<1x128xf32>
      %cst_95 = arith.constant dense<0.000000e+00> : vector<16xf32>
      %205 = vector.multi_reduction <add>, %198, %cst_95 [1] : vector<16x128xf32> to vector<16xf32>
      %206 = vector.shape_cast %205 : vector<16xf32> to vector<16x1xf32>
      %cst_96 = arith.constant 1.280000e+02 : f32
      %207 = vector.broadcast %cst_96 : f32 to vector<16x1xf32>
      %208 = arith.divf %206, %207 : vector<16x1xf32>
      %209 = vector.broadcast %208 : vector<16x1xf32> to vector<16x128xf32>
      %210 = arith.subf %198, %209 : vector<16x128xf32>
      %211 = arith.mulf %210, %210 : vector<16x128xf32>
      %cst_97 = arith.constant dense<0.000000e+00> : vector<16xf32>
      %212 = vector.multi_reduction <add>, %211, %cst_97 [1] : vector<16x128xf32> to vector<16xf32>
      %213 = vector.shape_cast %212 : vector<16xf32> to vector<16x1xf32>
      %cst_98 = arith.constant 1.280000e+02 : f32
      %214 = vector.broadcast %cst_98 : f32 to vector<16x1xf32>
      %215 = arith.divf %213, %214 : vector<16x1xf32>
      %216 = vector.broadcast %208 : vector<16x1xf32> to vector<16x128xf32>
      %217 = arith.subf %198, %216 : vector<16x128xf32>
      %cst_99 = arith.constant 9.99999974E-6 : f32
      %218 = vector.broadcast %cst_99 : f32 to vector<16x1xf32>
      %219 = arith.addf %215, %218 : vector<16x1xf32>
      %220 = math.rsqrt %219 : vector<16x1xf32>
      %221 = vector.broadcast %220 : vector<16x1xf32> to vector<16x128xf32>
      %222 = arith.mulf %217, %221 : vector<16x128xf32>
      %223 = vector.broadcast %203 : vector<1x128xf32> to vector<16x128xf32>
      %224 = arith.mulf %222, %223 : vector<16x128xf32>
      %225 = vector.broadcast %204 : vector<1x128xf32> to vector<16x128xf32>
      %226 = arith.addf %224, %225 : vector<16x128xf32>
      %c0_100 = arith.constant 0 : index
      %c0_101 = arith.constant 0 : index
      %c0_102 = arith.constant 0 : index
      %227 = vector.load %arg17[%c0_100, %c0_101, %c0_102] : memref<1x16x128xf32, #tpu.memory_space<vmem>>, vector<1x16x128xf32>
      %228 = vector.shape_cast %227 : vector<1x16x128xf32> to vector<16x128xf32>
      %229 = vector.shape_cast %226 : vector<16x128xf32> to vector<1x16x128xf32>
      tpu.vector_store %arg17[%c0_100, %c0_101, %c0_102], %229 {strides = array<i32>} : memref<1x16x128xf32, #tpu.memory_space<vmem>>, vector<1x16x128xf32>,
    } else {
    }
    return
  }
  func.func @transform_0(%arg0: i32, %arg1: i32) -> (i32, i32, i32) {
    %c0_i32 = arith.constant 0 : i32
    %c0_i32_0 = arith.constant 0 : i32
    %c0_i32_1 = arith.constant 0 : i32
    return %arg0, %c0_i32, %c0_i32_0 : i32, i32, i32
  }
  func.func @transform_1(%arg0: i32, %arg1: i32) -> (i32, i32, i32) {
    %c0_i32 = arith.constant 0 : i32
    %c0_i32_0 = arith.constant 0 : i32
    %c0_i32_1 = arith.constant 0 : i32
    return %arg1, %c0_i32, %c0_i32_0 : i32, i32, i32
  }
  func.func @transform_2(%arg0: i32, %arg1: i32) -> (i32, i32, i32) {
    %c0_i32 = arith.constant 0 : i32
    %c0_i32_0 = arith.constant 0 : i32
    %c0_i32_1 = arith.constant 0 : i32
    return %arg1, %c0_i32, %c0_i32_0 : i32, i32, i32
  }
  func.func @transform_3(%arg0: i32, %arg1: i32) -> (i32, i32, i32) {
    %c0_i32 = arith.constant 0 : i32
    %c0_i32_0 = arith.constant 0 : i32
    %c0_i32_1 = arith.constant 0 : i32
    return %arg1, %c0_i32, %c0_i32_0 : i32, i32, i32
  }
  func.func @transform_4(%arg0: i32, %arg1: i32) -> (i32, i32, i32) {
    %c0_i32 = arith.constant 0 : i32
    %c0_i32_0 = arith.constant 0 : i32
    %c0_i32_1 = arith.constant 0 : i32
    return %arg1, %c0_i32, %c0_i32_0 : i32, i32, i32
  }
  func.func @transform_5(%arg0: i32, %arg1: i32) -> (i32, i32, i32) {
    %c0_i32 = arith.constant 0 : i32
    %c0_i32_0 = arith.constant 0 : i32
    %c0_i32_1 = arith.constant 0 : i32
    return %arg1, %c0_i32, %c0_i32_0 : i32, i32, i32
  }
  func.func @transform_6(%arg0: i32, %arg1: i32) -> (i32, i32, i32) {
    %c0_i32 = arith.constant 0 : i32
    %c0_i32_0 = arith.constant 0 : i32
    %c0_i32_1 = arith.constant 0 : i32
    return %arg1, %c0_i32, %c0_i32_0 : i32, i32, i32
  }
  func.func @transform_7(%arg0: i32, %arg1: i32) -> (i32, i32, i32) {
    %c0_i32 = arith.constant 0 : i32
    %c0_i32_0 = arith.constant 0 : i32
    %c0_i32_1 = arith.constant 0 : i32
    return %arg1, %c0_i32, %c0_i32_0 : i32, i32, i32
  }
  func.func @transform_8(%arg0: i32, %arg1: i32) -> (i32, i32, i32) {
    %c0_i32 = arith.constant 0 : i32
    %c0_i32_0 = arith.constant 0 : i32
    %c0_i32_1 = arith.constant 0 : i32
    return %arg1, %c0_i32, %c0_i32_0 : i32, i32, i32
  }
  func.func @transform_9(%arg0: i32, %arg1: i32) -> (i32, i32, i32) {
    %c0_i32 = arith.constant 0 : i32
    %c0_i32_0 = arith.constant 0 : i32
    %c0_i32_1 = arith.constant 0 : i32
    return %arg1, %c0_i32, %c0_i32_0 : i32, i32, i32
  }
  func.func @transform_10(%arg0: i32, %arg1: i32) -> (i32, i32, i32) {
    %c0_i32 = arith.constant 0 : i32
    %c0_i32_0 = arith.constant 0 : i32
    %c0_i32_1 = arith.constant 0 : i32
    return %arg1, %c0_i32, %c0_i32_0 : i32, i32, i32
  }
  func.func @transform_11(%arg0: i32, %arg1: i32) -> (i32, i32, i32) {
    %c0_i32 = arith.constant 0 : i32
    %c0_i32_0 = arith.constant 0 : i32
    %c0_i32_1 = arith.constant 0 : i32
    return %arg1, %c0_i32, %c0_i32_0 : i32, i32, i32
  }
  func.func @transform_12(%arg0: i32, %arg1: i32) -> (i32, i32, i32) {
    %c0_i32 = arith.constant 0 : i32
    %c0_i32_0 = arith.constant 0 : i32
    %c0_i32_1 = arith.constant 0 : i32
    return %arg1, %c0_i32, %c0_i32_0 : i32, i32, i32
  }
  func.func @transform_13(%arg0: i32, %arg1: i32) -> (i32, i32) {
    %c0_i32 = arith.constant 0 : i32
    %c0_i32_0 = arith.constant 0 : i32
    %c0_i32_1 = arith.constant 0 : i32
    return %c0_i32, %c0_i32_0 : i32, i32
  }
  func.func @transform_14(%arg0: i32, %arg1: i32) -> (i32, i32) {
    %c0_i32 = arith.constant 0 : i32
    %c0_i32_0 = arith.constant 0 : i32
    %c0_i32_1 = arith.constant 0 : i32
    return %c0_i32, %c0_i32_0 : i32, i32
  }
  func.func @transform_15(%arg0: i32, %arg1: i32) -> (i32, i32, i32) {
    %c0_i32 = arith.constant 0 : i32
    %c0_i32_0 = arith.constant 0 : i32
    %c0_i32_1 = arith.constant 0 : i32
    return %arg0, %c0_i32, %c0_i32_0 : i32, i32, i32
  }
}

</mosaic_0001>

<llo_original>
// kernel: clip_forward.1
$region0: #{clip_forward.1}
  #allocation0 [shape = 'u32[]', space=smem, size = 0x4, offset = 0x4, fixed_abs, tag = 'smem constant byte address 0x4 - core index']
  #allocation1 [shape = 'u32[144,128]{1,0:T(1,128)}', space=vmem, size = 0x12000, scoped, tag = 'internal scratch']
  #allocation2 [shape = 'f32[16,128]{1,0:T(8,128)}', space=vmem, size = 0x2000, scoped, tag = 'scratch operand']
  #allocation3 [shape = 'bf16[16,128]{1,0:T(16,128)(2,1)}', space=vmem, size = 0x1000, scoped, tag = 'scratch operand']
  #allocation4 [shape = 'bf16[16,128]{1,0:T(16,128)(2,1)}', space=vmem, size = 0x1000, scoped, tag = 'scratch operand']
  #allocation5 [shape = 'bf16[16,128]{1,0:T(16,128)(2,1)}', space=vmem, size = 0x1000, scoped, tag = 'scratch operand']
  #allocation6 [shape = 'bf16[16,128]{1,0:T(16,128)(2,1)}', space=vmem, size = 0x1000, scoped, tag = 'scratch operand']
  %s0 = inlined_call_operand.hbm [shape: f32[2,16,128], index: 0, kind: input, shape index: {}, may-alias: {0,15}]
  %s1 = inlined_call_operand.vmem [shape: f32[2,1,128], index: 1, kind: input, shape index: {}]
  %s2 = inlined_call_operand.vmem [shape: f32[2,1,128], index: 2, kind: input, shape index: {}]
  %s3 = inlined_call_operand.vmem [shape: bf16[2,128,384], index: 3, kind: input, shape index: {}]
  %s4 = inlined_call_operand.vmem [shape: f32[2,1,384], index: 4, kind: input, shape index: {}]
  %s5 = inlined_call_operand.hbm [shape: bf16[2,128,128], index: 5, kind: input, shape index: {}]
  %s6 = inlined_call_operand.vmem [shape: f32[2,1,128], index: 6, kind: input, shape index: {}]
  %s7 = inlined_call_operand.vmem [shape: f32[2,1,128], index: 7, kind: input, shape index: {}]
  %s8 = inlined_call_operand.vmem [shape: f32[2,1,128], index: 8, kind: input, shape index: {}]
  %s9 = inlined_call_operand.hbm [shape: bf16[2,128,512], index: 9, kind: input, shape index: {}]
  %s10 = inlined_call_operand.vmem [shape: f32[2,1,512], index: 10, kind: input, shape index: {}]
  %s11 = inlined_call_operand.hbm [shape: bf16[2,512,128], index: 11, kind: input, shape index: {}]
  %s12 = inlined_call_operand.vmem [shape: f32[2,1,128], index: 12, kind: input, shape index: {}]
  %s13 = inlined_call_operand.vmem [shape: f32[1,128], index: 13, kind: input, shape index: {}]
  %s14 = inlined_call_operand.vmem [shape: f32[1,128], index: 14, kind: input, shape index: {}]
  %s15 = inlined_call_operand.hbm [shape: f32[2,16,128], index: 15, kind: output, shape index: {}, may-alias: {0,15}]
  %s16 = sld [smem:[#allocation0]]
  $region117: #{clip_forward.1} parent=0
    _
  %s18 = ssub.s32 1, %s16
  %s19 = scalar_select 0, %s18, %s16
  $region1: #{clip_forward.1} parent=0
    #allocation7 [shape = 'u8[16384]{0}', space=vmem, size = 0x4000, scoped, tag = 'input window, operand 0']
    #allocation8 [shape = 's32[2]{0}', space=sflag, size = 0x8, scoped, tag = 'scoped memory for clip_forward.1']
    #allocation9 [shape = 's32[2]{0}', space=sflag, size = 0x8, scoped, tag = 'scoped memory for clip_forward.1']
    #allocation10 [shape = 'u8[65536]{0}', space=vmem, size = 0x10000, scoped, tag = 'input window, operand 5']
    #allocation11 [shape = 's32[2]{0}', space=sflag, size = 0x8, scoped, tag = 'scoped memory for clip_forward.1']
    #allocation12 [shape = 'u8[262144]{0}', space=vmem, size = 0x40000, scoped, tag = 'input window, operand 9']
    #allocation13 [shape = 'u8[262144]{0}', space=vmem, size = 0x40000, scoped, tag = 'input window, operand 11']
    #allocation14 [shape = 's32[2]{0}', space=sflag, size = 0x8, scoped, tag = 'scoped memory for clip_forward.1']
    #allocation15 [shape = 'u8[16384]{0}', space=vmem, size = 0x4000, scoped, tag = 'output window, operand 0']
    %20 = vsyncpa [#allocation8], 0
    %s21 = scalar_lea.sflag [#allocation8], 1
    %22 = vsyncpa %s21, 0
    %23 = vsyncpa [#allocation11], 0
    %s24 = scalar_lea.sflag [#allocation11], 1
    %25 = vsyncpa %s24, 0
    %26 = vsyncpa [#allocation14], 0
    %s27 = scalar_lea.sflag [#allocation14], 1
    %28 = vsyncpa %s27, 0
    %29 = vsyncpa [#allocation9], 0
    %s30 = scalar_lea.sflag [#allocation9], 1
    %31 = vsyncpa %s30, 0
    loop: start=0, step=1, limit=6
    $region2: #{clip_forward.1} parent=1 // loop_pre_header
      _
    $region3: #{clip_forward.1} parent=1 // loop_header
      %s33 = sphi 0, %s37
      %p34 = scmp.ge.s32.totalorder %s33, 6
      %s40 = sphi 0, %s52
      %s41 = sphi 0, %s48
      %s42 = sphi 0, %s40
      %s43 = sphi 0, %s41
      %s44 = sphi 0, %s42
      %s45 = sphi 0, %s43
      %s55 = sphi 0, %s57
      %s58 = sphi 0, %s55
      %s59 = sphi 0, %s58
      %s75 = sphi 0, %s59
      %s81 = sphi 0, %s83
      %s84 = sphi 0, %s81
      %s85 = sphi 0, %s84
      %s101 = sphi 0, %s85
      %s107 = sphi 0, %s109
      %s110 = sphi 0, %s107
      %s111 = sphi 0, %s110
      %s127 = sphi 0, %s111
      %s133 = sphi 0, %s135
      %s136 = sphi 0, %s133
      %s137 = sphi 0, %s136
      %s153 = sphi 0, %s137
      %s159 = sphi 0, %s161
      %s162 = sphi 0, %s159
      %s163 = sphi 0, %s162
      %s179 = sphi 0, %s163
      %s185 = sphi 0, %s187
      %s188 = sphi 0, %s185
      %s189 = sphi 0, %s188
      %s205 = sphi 0, %s189
      %s211 = sphi 0, %s213
      %s214 = sphi 0, %s211
      %s215 = sphi 0, %s214
      %s231 = sphi 0, %s215
      %s237 = sphi 0, %s239
      %s240 = sphi 0, %s237
      %s241 = sphi 0, %s240
      %s257 = sphi 0, %s241
      %s263 = sphi 0, %s265
      %s266 = sphi 0, %s263
      %s267 = sphi 0, %s266
      %s283 = sphi 0, %s267
      %s289 = sphi 0, %s291
      %s292 = sphi 0, %s289
      %s293 = sphi 0, %s292
      %s309 = sphi 0, %s293
      %s315 = sphi 0, %s317
      %s318 = sphi 0, %s315
      %s319 = sphi 0, %s318
      %s335 = sphi 0, %s319
      %s341 = sphi 0, %s343
      %s344 = sphi 0, %s341
      %s345 = sphi 0, %s344
      %s361 = sphi 0, %s345
      %s367 = sphi 0, %s369
      %s370 = sphi 0, %s367
      %s371 = sphi 0, %s370
      %s387 = sphi 0, %s371
      %s391 = sphi 0, %s391
      %s393 = sphi 0, %s391
      %s394 = sphi 0, %s393
      %s408 = sphi 0, %s394
      %s412 = sphi 0, %s412
      %s414 = sphi 0, %s412
      %s415 = sphi 0, %s414
      %s429 = sphi 0, %s415
      %s435 = sphi 0, %s437
      %s438 = sphi 0, %s435
      %s439 = sphi 0, %s438
      %s455 = sphi 0, %s439
    $region4: #{clip_forward.1} parent=1 // loop_header_branch
      %36 = sbr.rel (%p34) target = $region8
    $region5: #{clip_forward.1} parent=1 // loop_body
      %s38 = ssub.s32 %s33, 1
      %s39 = ssub.s32 %s33, 2
      %s46 = sadd.s32 1, %s41
      %p47 = scmp.ge.s32.totalorder %s46, 2
      %s48 = scalar_select %p47, 0, %s46
      %s49 = sadd.s32 1, %s40
      %s50 = scalar_select %p47, %s49, %s40
      %p51 = scmp.ge.s32.totalorder %s50, 2
      %s52 = scalar_select %p51, 0, %s50
      %s53 = ssub.s32 %s40, %s52
      %p54 = scmp.eq.s32.totalorder %s53, 0
      %s56 = sadd.s32 %s55, 1
      %s57 = scalar_select %p54, %s55, %s56
      %p60 = pneg %p54
      %p61 = scmp.eq.s32.totalorder %s33, 3
      %p62 = por %p60, %p61
      %p63 = scmp.ne.s32.totalorder %s55, %s58
      %p64 = scmp.eq.s32.totalorder %s33, 0
      %p65 = por %p63, %p64
      %p66 = scmp.ne.s32.totalorder %s55, %s58
      %p67 = scmp.eq.s32.totalorder %s38, 3
      %p68 = por %p66, %p67
      %p69 = scmp.ne.s32.totalorder %s58, %s59
      %p70 = scmp.eq.s32.totalorder %s38, 0
      %p71 = por %p69, %p70
      %p72 = scmp.ne.s32.totalorder %s58, %s59
      %p73 = scmp.eq.s32.totalorder %s39, 3
      %p74 = por %p72, %p73
      %p76 = scmp.ne.s32.totalorder %s59, %s75
      %p77 = scmp.eq.s32.totalorder %s39, 0
      %p78 = por %p76, %p77
      %s79 = ssub.s32 %s41, %s48
      %p80 = scmp.eq.s32.totalorder %s79, 0
      %s82 = sadd.s32 %s81, 1
      %s83 = scalar_select %p80, %s81, %s82
      %p86 = pneg %p80
      %p87 = scmp.eq.s32.totalorder %s33, 3
      %p88 = por %p86, %p87
      %p89 = scmp.ne.s32.totalorder %s81, %s84
      %p90 = scmp.eq.s32.totalorder %s33, 0
      %p91 = por %p89, %p90
      %p92 = scmp.ne.s32.totalorder %s81, %s84
      %p93 = scmp.eq.s32.totalorder %s38, 3
      %p94 = por %p92, %p93
      %p95 = scmp.ne.s32.totalorder %s84, %s85
      %p96 = scmp.eq.s32.totalorder %s38, 0
      %p97 = por %p95, %p96
      %p98 = scmp.ne.s32.totalorder %s84, %s85
      %p99 = scmp.eq.s32.totalorder %s39, 3
      %p100 = por %p98, %p99
      %p102 = scmp.ne.s32.totalorder %s85, %s101
      %p103 = scmp.eq.s32.totalorder %s39, 0
      %p104 = por %p102, %p103
      %s105 = ssub.s32 %s41, %s48
      %p106 = scmp.eq.s32.totalorder %s105, 0
      %s108 = sadd.s32 %s107, 1
      %s109 = scalar_select %p106, %s107, %s108
      %p112 = pneg %p106
      %p113 = scmp.eq.s32.totalorder %s33, 3
      %p114 = por %p112, %p113
      %p115 = scmp.ne.s32.totalorder %s107, %s110
      %p116 = scmp.eq.s32.totalorder %s33, 0
      %p117 = por %p115, %p116
      %p118 = scmp.ne.s32.totalorder %s107, %s110
      %p119 = scmp.eq.s32.totalorder %s38, 3
      %p120 = por %p118, %p119
      %p121 = scmp.ne.s32.totalorder %s110, %s111
      %p122 = scmp.eq.s32.totalorder %s38, 0
      %p123 = por %p121, %p122
      %p124 = scmp.ne.s32.totalorder %s110, %s111
      %p125 = scmp.eq.s32.totalorder %s39, 3
      %p126 = por %p124, %p125
      %p128 = scmp.ne.s32.totalorder %s111, %s127
      %p129 = scmp.eq.s32.totalorder %s39, 0
      %p130 = por %p128, %p129
      %s131 = ssub.s32 %s41, %s48
      %p132 = scmp.eq.s32.totalorder %s131, 0
      %s134 = sadd.s32 %s133, 1
      %s135 = scalar_select %p132, %s133, %s134
      %p138 = pneg %p132
      %p139 = scmp.eq.s32.totalorder %s33, 3
      %p140 = por %p138, %p139
      %p141 = scmp.ne.s32.totalorder %s133, %s136
      %p142 = scmp.eq.s32.totalorder %s33, 0
      %p143 = por %p141, %p142
      %p144 = scmp.ne.s32.totalorder %s133, %s136
      %p145 = scmp.eq.s32.totalorder %s38, 3
      %p146 = por %p144, %p145
      %p147 = scmp.ne.s32.totalorder %s136, %s137
      %p148 = scmp.eq.s32.totalorder %s38, 0
      %p149 = por %p147, %p148
      %p150 = scmp.ne.s32.totalorder %s136, %s137
      %p151 = scmp.eq.s32.totalorder %s39, 3
      %p152 = por %p150, %p151
      %p154 = scmp.ne.s32.totalorder %s137, %s153
      %p155 = scmp.eq.s32.totalorder %s39, 0
      %p156 = por %p154, %p155
      %s157 = ssub.s32 %s41, %s48
      %p158 = scmp.eq.s32.totalorder %s157, 0
      %s160 = sadd.s32 %s159, 1
      %s161 = scalar_select %p158, %s159, %s160
      %p164 = pneg %p158
      %p165 = scmp.eq.s32.totalorder %s33, 3
      %p166 = por %p164, %p165
      %p167 = scmp.ne.s32.totalorder %s159, %s162
      %p168 = scmp.eq.s32.totalorder %s33, 0
      %p169 = por %p167, %p168
      %p170 = scmp.ne.s32.totalorder %s159, %s162
      %p171 = scmp.eq.s32.totalorder %s38, 3
      %p172 = por %p170, %p171
      %p173 = scmp.ne.s32.totalorder %s162, %s163
      %p174 = scmp.eq.s32.totalorder %s38, 0
      %p175 = por %p173, %p174
      %p176 = scmp.ne.s32.totalorder %s162, %s163
      %p177 = scmp.eq.s32.totalorder %s39, 3
      %p178 = por %p176, %p177
      %p180 = scmp.ne.s32.totalorder %s163, %s179
      %p181 = scmp.eq.s32.totalorder %s39, 0
      %p182 = por %p180, %p181
      %s183 = ssub.s32 %s41, %s48
      %p184 = scmp.eq.s32.totalorder %s183, 0
      %s186 = sadd.s32 %s185, 1
      %s187 = scalar_select %p184, %s185, %s186
      %p190 = pneg %p184
      %p191 = scmp.eq.s32.totalorder %s33, 3
      %p192 = por %p190, %p191
      %p193 = scmp.ne.s32.totalorder %s185, %s188
      %p194 = scmp.eq.s32.totalorder %s33, 0
      %p195 = por %p193, %p194
      %p196 = scmp.ne.s32.totalorder %s185, %s188
      %p197 = scmp.eq.s32.totalorder %s38, 3
      %p198 = por %p196, %p197
      %p199 = scmp.ne.s32.totalorder %s188, %s189
      %p200 = scmp.eq.s32.totalorder %s38, 0
      %p201 = por %p199, %p200
      %p202 = scmp.ne.s32.totalorder %s188, %s189
      %p203 = scmp.eq.s32.totalorder %s39, 3
      %p204 = por %p202, %p203
      %p206 = scmp.ne.s32.totalorder %s189, %s205
      %p207 = scmp.eq.s32.totalorder %s39, 0
      %p208 = por %p206, %p207
      %s209 = ssub.s32 %s41, %s48
      %p210 = scmp.eq.s32.totalorder %s209, 0
      %s212 = sadd.s32 %s211, 1
      %s213 = scalar_select %p210, %s211, %s212
      %p216 = pneg %p210
      %p217 = scmp.eq.s32.totalorder %s33, 3
      %p218 = por %p216, %p217
      %p219 = scmp.ne.s32.totalorder %s211, %s214
      %p220 = scmp.eq.s32.totalorder %s33, 0
      %p221 = por %p219, %p220
      %p222 = scmp.ne.s32.totalorder %s211, %s214
      %p223 = scmp.eq.s32.totalorder %s38, 3
      %p224 = por %p222, %p223
      %p225 = scmp.ne.s32.totalorder %s214, %s215
      %p226 = scmp.eq.s32.totalorder %s38, 0
      %p227 = por %p225, %p226
      %p228 = scmp.ne.s32.totalorder %s214, %s215
      %p229 = scmp.eq.s32.totalorder %s39, 3
      %p230 = por %p228, %p229
      %p232 = scmp.ne.s32.totalorder %s215, %s231
      %p233 = scmp.eq.s32.totalorder %s39, 0
      %p234 = por %p232, %p233
      %s235 = ssub.s32 %s41, %s48
      %p236 = scmp.eq.s32.totalorder %s235, 0
      %s238 = sadd.s32 %s237, 1
      %s239 = scalar_select %p236, %s237, %s238
      %p242 = pneg %p236
      %p243 = scmp.eq.s32.totalorder %s33, 3
      %p244 = por %p242, %p243
      %p245 = scmp.ne.s32.totalorder %s237, %s240
      %p246 = scmp.eq.s32.totalorder %s33, 0
      %p247 = por %p245, %p246
      %p248 = scmp.ne.s32.totalorder %s237, %s240
      %p249 = scmp.eq.s32.totalorder %s38, 3
      %p250 = por %p248, %p249
      %p251 = scmp.ne.s32.totalorder %s240, %s241
      %p252 = scmp.eq.s32.totalorder %s38, 0
      %p253 = por %p251, %p252
      %p254 = scmp.ne.s32.totalorder %s240, %s241
      %p255 = scmp.eq.s32.totalorder %s39, 3
      %p256 = por %p254, %p255
      %p258 = scmp.ne.s32.totalorder %s241, %s257
      %p259 = scmp.eq.s32.totalorder %s39, 0
      %p260 = por %p258, %p259
      %s261 = ssub.s32 %s41, %s48
      %p262 = scmp.eq.s32.totalorder %s261, 0
      %s264 = sadd.s32 %s263, 1
      %s265 = scalar_select %p262, %s263, %s264
      %p268 = pneg %p262
      %p269 = scmp.eq.s32.totalorder %s33, 3
      %p270 = por %p268, %p269
      %p271 = scmp.ne.s32.totalorder %s263, %s266
      %p272 = scmp.eq.s32.totalorder %s33, 0
      %p273 = por %p271, %p272
      %p274 = scmp.ne.s32.totalorder %s263, %s266
      %p275 = scmp.eq.s32.totalorder %s38, 3
      %p276 = por %p274, %p275
      %p277 = scmp.ne.s32.totalorder %s266, %s267
      %p278 = scmp.eq.s32.totalorder %s38, 0
      %p279 = por %p277, %p278
      %p280 = scmp.ne.s32.totalorder %s266, %s267
      %p281 = scmp.eq.s32.totalorder %s39, 3
      %p282 = por %p280, %p281
      %p284 = scmp.ne.s32.totalorder %s267, %s283
      %p285 = scmp.eq.s32.totalorder %s39, 0
      %p286 = por %p284, %p285
      %s287 = ssub.s32 %s41, %s48
      %p288 = scmp.eq.s32.totalorder %s287, 0
      %s290 = sadd.s32 %s289, 1
      %s291 = scalar_select %p288, %s289, %s290
      %p294 = pneg %p288
      %p295 = scmp.eq.s32.totalorder %s33, 3
      %p296 = por %p294, %p295
      %p297 = scmp.ne.s32.totalorder %s289, %s292
      %p298 = scmp.eq.s32.totalorder %s33, 0
      %p299 = por %p297, %p298
      %p300 = scmp.ne.s32.totalorder %s289, %s292
      %p301 = scmp.eq.s32.totalorder %s38, 3
      %p302 = por %p300, %p301
      %p303 = scmp.ne.s32.totalorder %s292, %s293
      %p304 = scmp.eq.s32.totalorder %s38, 0
      %p305 = por %p303, %p304
      %p306 = scmp.ne.s32.totalorder %s292, %s293
      %p307 = scmp.eq.s32.totalorder %s39, 3
      %p308 = por %p306, %p307
      %p310 = scmp.ne.s32.totalorder %s293, %s309
      %p311 = scmp.eq.s32.totalorder %s39, 0
      %p312 = por %p310, %p311
      %s313 = ssub.s32 %s41, %s48
      %p314 = scmp.eq.s32.totalorder %s313, 0
      %s316 = sadd.s32 %s315, 1
      %s317 = scalar_select %p314, %s315, %s316
      %p320 = pneg %p314
      %p321 = scmp.eq.s32.totalorder %s33, 3
      %p322 = por %p320, %p321
      %p323 = scmp.ne.s32.totalorder %s315, %s318
      %p324 = scmp.eq.s32.totalorder %s33, 0
      %p325 = por %p323, %p324
      %p326 = scmp.ne.s32.totalorder %s315, %s318
      %p327 = scmp.eq.s32.totalorder %s38, 3
      %p328 = por %p326, %p327
      %p329 = scmp.ne.s32.totalorder %s318, %s319
      %p330 = scmp.eq.s32.totalorder %s38, 0
      %p331 = por %p329, %p330
      %p332 = scmp.ne.s32.totalorder %s318, %s319
      %p333 = scmp.eq.s32.totalorder %s39, 3
      %p334 = por %p332, %p333
      %p336 = scmp.ne.s32.totalorder %s319, %s335
      %p337 = scmp.eq.s32.totalorder %s39, 0
      %p338 = por %p336, %p337
      %s339 = ssub.s32 %s41, %s48
      %p340 = scmp.eq.s32.totalorder %s339, 0
      %s342 = sadd.s32 %s341, 1
      %s343 = scalar_select %p340, %s341, %s342
      %p346 = pneg %p340
      %p347 = scmp.eq.s32.totalorder %s33, 3
      %p348 = por %p346, %p347
      %p349 = scmp.ne.s32.totalorder %s341, %s344
      %p350 = scmp.eq.s32.totalorder %s33, 0
      %p351 = por %p349, %p350
      %p352 = scmp.ne.s32.totalorder %s341, %s344
      %p353 = scmp.eq.s32.totalorder %s38, 3
      %p354 = por %p352, %p353
      %p355 = scmp.ne.s32.totalorder %s344, %s345
      %p356 = scmp.eq.s32.totalorder %s38, 0
      %p357 = por %p355, %p356
      %p358 = scmp.ne.s32.totalorder %s344, %s345
      %p359 = scmp.eq.s32.totalorder %s39, 3
      %p360 = por %p358, %p359
      %p362 = scmp.ne.s32.totalorder %s345, %s361
      %p363 = scmp.eq.s32.totalorder %s39, 0
      %p364 = por %p362, %p363
      %s365 = ssub.s32 %s41, %s48
      %p366 = scmp.eq.s32.totalorder %s365, 0
      %s368 = sadd.s32 %s367, 1
      %s369 = scalar_select %p366, %s367, %s368
      %p372 = pneg %p366
      %p373 = scmp.eq.s32.totalorder %s33, 3
      %p374 = por %p372, %p373
      %p375 = scmp.ne.s32.totalorder %s367, %s370
      %p376 = scmp.eq.s32.totalorder %s33, 0
      %p377 = por %p375, %p376
      %p378 = scmp.ne.s32.totalorder %s367, %s370
      %p379 = scmp.eq.s32.totalorder %s38, 3
      %p380 = por %p378, %p379
      %p381 = scmp.ne.s32.totalorder %s370, %s371
      %p382 = scmp.eq.s32.totalorder %s38, 0
      %p383 = por %p381, %p382
      %p384 = scmp.ne.s32.totalorder %s370, %s371
      %p385 = scmp.eq.s32.totalorder %s39, 3
      %p386 = por %p384, %p385
      %p388 = scmp.ne.s32.totalorder %s371, %s387
      %p389 = scmp.eq.s32.totalorder %s39, 0
      %p390 = por %p388, %p389
      %s392 = sadd.s32 %s391, 1
      %p395 = scmp.eq.s32.totalorder %s33, 3
      %p396 = scmp.ne.s32.totalorder %s391, %s393
      %p397 = scmp.eq.s32.totalorder %s33, 0
      %p398 = por %p396, %p397
      %p399 = scmp.ne.s32.totalorder %s391, %s393
      %p400 = scmp.eq.s32.totalorder %s38, 3
      %p401 = por %p399, %p400
      %p402 = scmp.ne.s32.totalorder %s393, %s394
      %p403 = scmp.eq.s32.totalorder %s38, 0
      %p404 = por %p402, %p403
      %p405 = scmp.ne.s32.totalorder %s393, %s394
      %p406 = scmp.eq.s32.totalorder %s39, 3
      %p407 = por %p405, %p406
      %p409 = scmp.ne.s32.totalorder %s394, %s408
      %p410 = scmp.eq.s32.totalorder %s39, 0
      %p411 = por %p409, %p410
      %s413 = sadd.s32 %s412, 1
      %p416 = scmp.eq.s32.totalorder %s33, 3
      %p417 = scmp.ne.s32.totalorder %s412, %s414
      %p418 = scmp.eq.s32.totalorder %s33, 0
      %p419 = por %p417, %p418
      %p420 = scmp.ne.s32.totalorder %s412, %s414
      %p421 = scmp.eq.s32.totalorder %s38, 3
      %p422 = por %p420, %p421
      %p423 = scmp.ne.s32.totalorder %s414, %s415
      %p424 = scmp.eq.s32.totalorder %s38, 0
      %p425 = por %p423, %p424
      %p426 = scmp.ne.s32.totalorder %s414, %s415
      %p427 = scmp.eq.s32.totalorder %s39, 3
      %p428 = por %p426, %p427
      %p430 = scmp.ne.s32.totalorder %s415, %s429
      %p431 = scmp.eq.s32.totalorder %s39, 0
      %p432 = por %p430, %p431
      %s433 = ssub.s32 %s40, %s52
      %p434 = scmp.eq.s32.totalorder %s433, 0
      %s436 = sadd.s32 %s435, 1
      %s437 = scalar_select %p434, %s435, %s436
      %p440 = pneg %p434
      %p441 = scmp.eq.s32.totalorder %s33, 3
      %p442 = por %p440, %p441
      %p443 = scmp.ne.s32.totalorder %s435, %s438
      %p444 = scmp.eq.s32.totalorder %s33, 0
      %p445 = por %p443, %p444
      %p446 = scmp.ne.s32.totalorder %s435, %s438
      %p447 = scmp.eq.s32.totalorder %s38, 3
      %p448 = por %p446, %p447
      %p449 = scmp.ne.s32.totalorder %s438, %s439
      %p450 = scmp.eq.s32.totalorder %s38, 0
      %p451 = por %p449, %p450
      %p452 = scmp.ne.s32.totalorder %s438, %s439
      %p453 = scmp.eq.s32.totalorder %s39, 3
      %p454 = por %p452, %p453
      %p456 = scmp.ne.s32.totalorder %s439, %s455
      %p457 = scmp.eq.s32.totalorder %s39, 0
      %p458 = por %p456, %p457
      %p459 = scmp.le.s32.totalorder 1, %s33
      %p460 = scmp.lt.s32.totalorder %s33, 5
      %p461 = pnand %p459, %p460
      %p462 = pneg %p461
      // Predicated region
      $region9: #{clip_forward.1} parent=5 // pred_check
        _
      $region10: #{clip_forward.1} parent=5 // pred_check_branch
        %464 = sbr.rel (%p461) target = $region12
      $region11: #{clip_forward.1} parent=5 // pred_region
        %s465 = ssub.s32 %s33, 1
        // Predicated region
        $region13: #{clip_forward.1} parent=11 // pred_check
          %p466 = pneg %p404
        $region14: #{clip_forward.1} parent=11 // pred_check_branch
          %468 = sbr.rel (%p466) target = $region16
        $region15: #{clip_forward.1} parent=11 // pred_region
          _
        $region16: #{clip_forward.1} parent=11 // pred_fallthru
          _
        // Predicated region
        $region17: #{clip_forward.1} parent=11 // pred_check
          %p469 = pneg %p425
        $region18: #{clip_forward.1} parent=11 // pred_check_branch
          %471 = sbr.rel (%p469) target = $region20
        $region19: #{clip_forward.1} parent=11 // pred_region
          _
        $region20: #{clip_forward.1} parent=11 // pred_fallthru
          _
      $region12: #{clip_forward.1} parent=5 // pred_fallthru
        _
      %p472 = scmp.lt.s32.totalorder %s33, 4
      // Predicated region
      $region21: #{clip_forward.1} parent=5 // pred_check
        %p473 = pneg %p472
      $region22: #{clip_forward.1} parent=5 // pred_check_branch
        %475 = sbr.rel (%p473) target = $region24
      $region23: #{clip_forward.1} parent=5 // pred_region
        // Predicated region
        $region25: #{clip_forward.1} parent=23 // pred_check
          %p476 = pneg %p65
        $region26: #{clip_forward.1} parent=23 // pred_check_branch
          %478 = sbr.rel (%p476) target = $region28
        $region27: #{clip_forward.1} parent=23 // pred_region
          %s479 = sand.u32 %s55, 1
          %s480 = scalar_lea.sflag [#allocation8], %s479
          %s481 = sand.u32 %s55, 1
          %s482 = smul.addr %s481, 16
          %s483 = scalar_lea.vmem [#allocation7], %s482
          %s485 = ssub.s32 256, 256
          %486 = vsyncadd %s480, %s485
          %s487 = smul.addr %s40, 2
          %s488 = smul.addr %s487, 128
          %s489 = scalar_lea.hbm %s0, %s488
          %s490 = sshll.u32 %s483, 4
          %s491 = int_to_ptr.vmem [resolvable:$true] %s490
          %496 = dma.hbm_to_vmem [thread:$0]  %s489, 256, %s491, %s480, 128, 128, 8
        $region28: #{clip_forward.1} parent=23 // pred_fallthru
          _
        // Predicated region
        $region29: #{clip_forward.1} parent=23 // pred_check
          %p497 = pneg %p91
        $region30: #{clip_forward.1} parent=23 // pred_check_branch
          %499 = sbr.rel (%p497) target = $region32
        $region31: #{clip_forward.1} parent=23 // pred_region
          %p500 = scmp.lt.s32.totalorder %s41, 1
          %s501 = scalar_select %p500, %s41, 1
          %s502 = scalar_lea.vmem %s1, %s501
        $region32: #{clip_forward.1} parent=23 // pred_fallthru
          _
        // Predicated region
        $region33: #{clip_forward.1} parent=23 // pred_check
          %p503 = pneg %p117
        $region34: #{clip_forward.1} parent=23 // pred_check_branch
          %505 = sbr.rel (%p503) target = $region36
        $region35: #{clip_forward.1} parent=23 // pred_region
          %p506 = scmp.lt.s32.totalorder %s41, 1
          %s507 = scalar_select %p506, %s41, 1
          %s508 = scalar_lea.vmem %s2, %s507
        $region36: #{clip_forward.1} parent=23 // pred_fallthru
          _
        // Predicated region
        $region37: #{clip_forward.1} parent=23 // pred_check
          %p509 = pneg %p143
        $region38: #{clip_forward.1} parent=23 // pred_check_branch
          %511 = sbr.rel (%p509) target = $region40
        $region39: #{clip_forward.1} parent=23 // pred_region
          %p512 = scmp.lt.s32.totalorder %s41, 1
          %s513 = scalar_select %p512, %s41, 1
          %s514 = smul.addr %s513, 48
          %s515 = smul.addr %s514, 4
          %s516 = scalar_lea.vmem %s3, %s515
        $region40: #{clip_forward.1} parent=23 // pred_fallthru
          _
        // Predicated region
        $region41: #{clip_forward.1} parent=23 // pred_check
          %p517 = pneg %p169
        $region42: #{clip_forward.1} parent=23 // pred_check_branch
          %519 = sbr.rel (%p517) target = $region44
        $region43: #{clip_forward.1} parent=23 // pred_region
          %p520 = scmp.lt.s32.totalorder %s41, 1
          %s521 = scalar_select %p520, %s41, 1
          %s522 = smul.addr %s521, 3
          %s523 = scalar_lea.vmem %s4, %s522
        $region44: #{clip_forward.1} parent=23 // pred_fallthru
          _
        // Predicated region
        $region45: #{clip_forward.1} parent=23 // pred_check
          %p524 = pneg %p195
        $region46: #{clip_forward.1} parent=23 // pred_check_branch
          %526 = sbr.rel (%p524) target = $region48
        $region47: #{clip_forward.1} parent=23 // pred_region
          %s527 = sand.u32 %s33, 1
          %s528 = scalar_lea.sflag [#allocation11], %s527
          %s529 = sand.u32 %s185, 1
          %s530 = smul.addr %s529, 64
          %s531 = scalar_lea.vmem [#allocation10], %s530
          %s533 = ssub.s32 1024, 1024
          %534 = vsyncadd %s528, %s533
          %s535 = smul.addr %s41, 16
          %s536 = smul.addr %s535, 64
          %s537 = scalar_lea.hbm %s5, %s536
          %s538 = sshll.u32 %s531, 4
          %s539 = int_to_ptr.vmem [resolvable:$true] %s538
          %544 = dma.hbm_to_vmem [thread:$0]  %s537, 1024, %s539, %s528, 64, 64, 4
        $region48: #{clip_forward.1} parent=23 // pred_fallthru
          _
        // Predicated region
        $region49: #{clip_forward.1} parent=23 // pred_check
          %p545 = pneg %p221
        $region50: #{clip_forward.1} parent=23 // pred_check_branch
          %547 = sbr.rel (%p545) target = $region52
        $region51: #{clip_forward.1} parent=23 // pred_region
          %p548 = scmp.lt.s32.totalorder %s41, 1
          %s549 = scalar_select %p548, %s41, 1
          %s550 = scalar_lea.vmem %s6, %s549
        $region52: #{clip_forward.1} parent=23 // pred_fallthru
          _
        // Predicated region
        $region53: #{clip_forward.1} parent=23 // pred_check
          %p551 = pneg %p247
        $region54: #{clip_forward.1} parent=23 // pred_check_branch
          %553 = sbr.rel (%p551) target = $region56
        $region55: #{clip_forward.1} parent=23 // pred_region
          %p554 = scmp.lt.s32.totalorder %s41, 1
          %s555 = scalar_select %p554, %s41, 1
          %s556 = scalar_lea.vmem %s7, %s555
        $region56: #{clip_forward.1} parent=23 // pred_fallthru
          _
        // Predicated region
        $region57: #{clip_forward.1} parent=23 // pred_check
          %p557 = pneg %p273
        $region58: #{clip_forward.1} parent=23 // pred_check_branch
          %559 = sbr.rel (%p557) target = $region60
        $region59: #{clip_forward.1} parent=23 // pred_region
          %p560 = scmp.lt.s32.totalorder %s41, 1
          %s561 = scalar_select %p560, %s41, 1
          %s562 = scalar_lea.vmem %s8, %s561
        $region60: #{clip_forward.1} parent=23 // pred_fallthru
          _
        // Predicated region
        $region61: #{clip_forward.1} parent=23 // pred_check
          %p563 = pneg %p299
        $region62: #{clip_forward.1} parent=23 // pred_check_branch
          %565 = sbr.rel (%p563) target = $region64
        $region63: #{clip_forward.1} parent=23 // pred_region
          %s566 = sand.u32 %s33, 1
          %s567 = scalar_lea.sflag [#allocation11], %s566
          %s568 = sand.u32 %s289, 1
          %s569 = smul.addr %s568, 256
          %s570 = scalar_lea.vmem [#allocation12], %s569
          %s572 = ssub.s32 4096, 4096
          %573 = vsyncadd %s567, %s572
          %s574 = smul.addr %s41, 64
          %s575 = smul.addr %s574, 64
          %s576 = scalar_lea.hbm %s9, %s575
          %s577 = sshll.u32 %s570, 4
          %s578 = int_to_ptr.vmem [resolvable:$true] %s577
          %583 = dma.hbm_to_vmem [thread:$0]  %s576, 4096, %s578, %s567, 256, 256, 16
        $region64: #{clip_forward.1} parent=23 // pred_fallthru
          _
        // Predicated region
        $region65: #{clip_forward.1} parent=23 // pred_check
          %p584 = pneg %p325
        $region66: #{clip_forward.1} parent=23 // pred_check_branch
          %586 = sbr.rel (%p584) target = $region68
        $region67: #{clip_forward.1} parent=23 // pred_region
          %p587 = scmp.lt.s32.totalorder %s41, 1
          %s588 = scalar_select %p587, %s41, 1
          %s589 = smul.addr %s588, 4
          %s590 = scalar_lea.vmem %s10, %s589
        $region68: #{clip_forward.1} parent=23 // pred_fallthru
          _
        // Predicated region
        $region69: #{clip_forward.1} parent=23 // pred_check
          %p591 = pneg %p351
        $region70: #{clip_forward.1} parent=23 // pred_check_branch
          %593 = sbr.rel (%p591) target = $region72
        $region71: #{clip_forward.1} parent=23 // pred_region
          %s594 = sand.u32 %s341, 1
          %s595 = scalar_lea.sflag [#allocation14], %s594
          %s596 = sand.u32 %s341, 1
          %s597 = smul.addr %s596, 256
          %s598 = scalar_lea.vmem [#allocation13], %s597
          %s600 = ssub.s32 4096, 4096
          %601 = vsyncadd %s595, %s600
          %s602 = smul.addr %s41, 64
          %s603 = smul.addr %s602, 64
          %s604 = scalar_lea.hbm %s11, %s603
          %s605 = sshll.u32 %s598, 4
          %s606 = int_to_ptr.vmem [resolvable:$true] %s605
          %611 = dma.hbm_to_vmem [thread:$0]  %s604, 4096, %s606, %s595, 64, 64, 4
        $region72: #{clip_forward.1} parent=23 // pred_fallthru
          _
        // Predicated region
        $region73: #{clip_forward.1} parent=23 // pred_check
          %p612 = pneg %p377
        $region74: #{clip_forward.1} parent=23 // pred_check_branch
          %614 = sbr.rel (%p612) target = $region76
        $region75: #{clip_forward.1} parent=23 // pred_region
          %p615 = scmp.lt.s32.totalorder %s41, 1
          %s616 = scalar_select %p615, %s41, 1
          %s617 = scalar_lea.vmem %s12, %s616
        $region76: #{clip_forward.1} parent=23 // pred_fallthru
          _
      $region24: #{clip_forward.1} parent=5 // pred_fallthru
        _
      %p618 = scmp.le.s32.totalorder 1, %s33
      %p619 = scmp.lt.s32.totalorder %s33, 5
      %p620 = pnand %p618, %p619
      %p621 = pneg %p620
      // Predicated region
      $region77: #{clip_forward.1} parent=5 // pred_check
        _
      $region78: #{clip_forward.1} parent=5 // pred_check_branch
        %623 = sbr.rel (%p620) target = $region80
      $region79: #{clip_forward.1} parent=5 // pred_region
        %s624 = ssub.s32 %s33, 1
        %s625 = sand.u32 %s58, 1
        %s626 = scalar_lea.sflag [#allocation8], %s625
        %s627 = sand.u32 %s58, 1
        %s628 = smul.addr %s627, 16
        %s629 = scalar_lea.vmem [#allocation7], %s628
        // Predicated region
        $region81: #{clip_forward.1} parent=79 // pred_check
          %p630 = pneg %p71
        $region82: #{clip_forward.1} parent=79 // pred_check_branch
          %632 = sbr.rel (%p630) target = $region84
        $region83: #{clip_forward.1} parent=79 // pred_region
          %633 = dma.done %s626, 256
        $region84: #{clip_forward.1} parent=79 // pred_fallthru
          _
        %s634 = sand.u32 %s38, 1
        %s635 = scalar_lea.sflag [#allocation11], %s634
        %s636 = sand.u32 %s188, 1
        %s637 = smul.addr %s636, 64
        %s638 = scalar_lea.vmem [#allocation10], %s637
        // Predicated region
        $region85: #{clip_forward.1} parent=79 // pred_check
          %p639 = pneg %p201
        $region86: #{clip_forward.1} parent=79 // pred_check_branch
          %641 = sbr.rel (%p639) target = $region88
        $region87: #{clip_forward.1} parent=79 // pred_region
          %642 = dma.done %s635, 1024
        $region88: #{clip_forward.1} parent=79 // pred_fallthru
          _
        %s643 = sand.u32 %s38, 1
        %s644 = scalar_lea.sflag [#allocation11], %s643
        %s645 = sand.u32 %s292, 1
        %s646 = smul.addr %s645, 256
        %s647 = scalar_lea.vmem [#allocation12], %s646
        // Predicated region
        $region89: #{clip_forward.1} parent=79 // pred_check
          %p648 = pneg %p305
        $region90: #{clip_forward.1} parent=79 // pred_check_branch
          %650 = sbr.rel (%p648) target = $region92
        $region91: #{clip_forward.1} parent=79 // pred_region
          %651 = dma.done %s644, 4096
        $region92: #{clip_forward.1} parent=79 // pred_fallthru
          _
        %s652 = sand.u32 %s344, 1
        %s653 = scalar_lea.sflag [#allocation14], %s652
        %s654 = sand.u32 %s344, 1
        %s655 = smul.addr %s654, 256
        %s656 = scalar_lea.vmem [#allocation13], %s655
        // Predicated region
        $region93: #{clip_forward.1} parent=79 // pred_check
          %p657 = pneg %p357
        $region94: #{clip_forward.1} parent=79 // pred_check_branch
          %659 = sbr.rel (%p657) target = $region96
        $region95: #{clip_forward.1} parent=79 // pred_region
          %660 = dma.done %s653, 4096
        $region96: #{clip_forward.1} parent=79 // pred_fallthru
          _
        %s661 = sand.u32 %s58, 1
        %s662 = scalar_lea.sflag [#allocation8], %s661
        %s663 = sand.u32 %s58, 1
        %s664 = smul.addr %s663, 16
        %s665 = scalar_lea.vmem [#allocation7], %s664
        %p666 = pneg %p71
        %p667 = pneg %p68
        %p668 = scmp.lt.s32.totalorder %s43, 1
        %s669 = scalar_select %p668, %s43, 1
        %s670 = scalar_lea.vmem %s1, %s669
        %p671 = pneg %p97
        %p672 = pneg %p94
        %p673 = scmp.lt.s32.totalorder %s43, 1
        %s674 = scalar_select %p673, %s43, 1
        %s675 = scalar_lea.vmem %s2, %s674
        %p676 = pneg %p123
        %p677 = pneg %p120
        %p678 = scmp.lt.s32.totalorder %s43, 1
        %s679 = scalar_select %p678, %s43, 1
        %s680 = smul.addr %s679, 48
        %s681 = smul.addr %s680, 4
        %s682 = scalar_lea.vmem %s3, %s681
        %p683 = pneg %p149
        %p684 = pneg %p146
        %p685 = scmp.lt.s32.totalorder %s43, 1
        %s686 = scalar_select %p685, %s43, 1
        %s687 = smul.addr %s686, 3
        %s688 = scalar_lea.vmem %s4, %s687
        %p689 = pneg %p175
        %p690 = pneg %p172
        %s691 = sand.u32 %s38, 1
        %s692 = scalar_lea.sflag [#allocation11], %s691
        %s693 = sand.u32 %s188, 1
        %s694 = smul.addr %s693, 64
        %s695 = scalar_lea.vmem [#allocation10], %s694
        %p696 = pneg %p201
        %p697 = pneg %p198
        %p698 = scmp.lt.s32.totalorder %s43, 1
        %s699 = scalar_select %p698, %s43, 1
        %s700 = scalar_lea.vmem %s6, %s699
        %p701 = pneg %p227
        %p702 = pneg %p224
        %p703 = scmp.lt.s32.totalorder %s43, 1
        %s704 = scalar_select %p703, %s43, 1
        %s705 = scalar_lea.vmem %s7, %s704
        %p706 = pneg %p253
        %p707 = pneg %p250
        %p708 = scmp.lt.s32.totalorder %s43, 1
        %s709 = scalar_select %p708, %s43, 1
        %s710 = scalar_lea.vmem %s8, %s709
        %p711 = pneg %p279
        %p712 = pneg %p276
        %s713 = sand.u32 %s38, 1
        %s714 = scalar_lea.sflag [#allocation11], %s713
        %s715 = sand.u32 %s292, 1
        %s716 = smul.addr %s715, 256
        %s717 = scalar_lea.vmem [#allocation12], %s716
        %p718 = pneg %p305
        %p719 = pneg %p302
        %p720 = scmp.lt.s32.totalorder %s43, 1
        %s721 = scalar_select %p720, %s43, 1
        %s722 = smul.addr %s721, 4
        %s723 = scalar_lea.vmem %s10, %s722
        %p724 = pneg %p331
        %p725 = pneg %p328
        %s726 = sand.u32 %s344, 1
        %s727 = scalar_lea.sflag [#allocation14], %s726
        %s728 = sand.u32 %s344, 1
        %s729 = smul.addr %s728, 256
        %s730 = scalar_lea.vmem [#allocation13], %s729
        %p731 = pneg %p357
        %p732 = pneg %p354
        %p733 = scmp.lt.s32.totalorder %s43, 1
        %s734 = scalar_select %p733, %s43, 1
        %s735 = scalar_lea.vmem %s12, %s734
        %p736 = pneg %p383
        %p737 = pneg %p380
        %p738 = pneg %p404
        %p739 = pneg %p401
        %p740 = pneg %p425
        %p741 = pneg %p422
        %p742 = pneg %p451
        %p743 = pneg %p448
        %s744 = sand.u32 %s438, 1
        %s745 = scalar_lea.sflag [#allocation9], %s744
        %s746 = sand.u32 %s438, 1
        %s747 = smul.addr %s746, 16
        %s748 = scalar_lea.vmem [#allocation15], %s747
        %p749 = scmp.lt.s32.totalorder %s43, 1
        %s750 = scalar_select %p749, %s43, 1
        %s751 = scalar_lea.vmem %s1, %s750
        %p752 = scmp.lt.s32.totalorder %s43, 1
        %s753 = scalar_select %p752, %s43, 1
        %s754 = scalar_lea.vmem %s2, %s753
        %p755 = scmp.lt.s32.totalorder %s43, 1
        %s756 = scalar_select %p755, %s43, 1
        %s757 = smul.addr %s756, 48
        %s758 = smul.addr %s757, 4
        %s759 = scalar_lea.vmem %s3, %s758
        %p760 = scmp.lt.s32.totalorder %s43, 1
        %s761 = scalar_select %p760, %s43, 1
        %s762 = smul.addr %s761, 3
        %s763 = scalar_lea.vmem %s4, %s762
        %p764 = scmp.lt.s32.totalorder %s43, 1
        %s765 = scalar_select %p764, %s43, 1
        %s766 = scalar_lea.vmem %s6, %s765
        %p767 = scmp.lt.s32.totalorder %s43, 1
        %s768 = scalar_select %p767, %s43, 1
        %s769 = scalar_lea.vmem %s7, %s768
        %p770 = scmp.lt.s32.totalorder %s43, 1
        %s771 = scalar_select %p770, %s43, 1
        %s772 = scalar_lea.vmem %s8, %s771
        %p773 = scmp.lt.s32.totalorder %s43, 1
        %s774 = scalar_select %p773, %s43, 1
        %s775 = smul.addr %s774, 4
        %s776 = scalar_lea.vmem %s10, %s775
        %p777 = scmp.lt.s32.totalorder %s43, 1
        %s778 = scalar_select %p777, %s43, 1
        %s779 = scalar_lea.vmem %s12, %s778
        %p781 = scmp.eq.s32.totalorder %s43, 0
        // Predicated region
        $region97: #{clip_forward.1} parent=79 // pred_check
          %p782 = pneg %p781
        $region98: #{clip_forward.1} parent=79 // pred_check_branch
          %784 = sbr.rel (%p782) target = $region100
        $region99: #{clip_forward.1} parent=79 // pred_region
          %v785 = vld [vmem:[%s629] sm:$0xff]
          %v786 = vld [vmem:[%s629 + $0x8] sm:$0xff]
          %787 = vst [vmem:[#allocation2] sm:$0xff] %v785
          %788 = vst [vmem:[#allocation2 + $0x8] sm:$0xff] %v786
        $region100: #{clip_forward.1} parent=79 // pred_fallthru
          _
        %v789 = vld [vmem:[#allocation2] sm:$0xff]
        %v790 = vld [vmem:[#allocation2 + $0x8] sm:$0xff]
        %v791 = vld [vmem:[%s751] sm:$0x1]
        %v792 = vld [vmem:[%s754] sm:$0x1]
        %793 = vadd.xlane.f32.xlu0 %v789
        %v794 = vpop.xlane.xlu0 %793
        %795 = vadd.xlane.f32.xlu0 %v790
        %v796 = vpop.xlane.xlu0 %795
        %v797 = vrcp.pop 128.0
        %v798 = vmul.f32 %v794, %v797
        %v799 = vmul.f32 %v796, %v797
        %v800 = vsub.f32 %v789, %v798
        %v801 = vsub.f32 %v790, %v799
        %v802 = vmul.f32 %v800, %v800
        %v803 = vmul.f32 %v801, %v801
        %804 = vadd.xlane.f32.xlu0 %v802
        %v805 = vpop.xlane.xlu0 %804
        %806 = vadd.xlane.f32.xlu0 %v803
        %v807 = vpop.xlane.xlu0 %806
        %v808 = vmul.f32 %v805, %v797
        %v809 = vmul.f32 %v807, %v797
        %v810 = vadd.f32 %v808, 1e-05
        %v811 = vadd.f32 %v809, 1e-05
        %v812 = vrsqrt.pop %v810
        %v813 = vrsqrt.pop %v811
        %v814 = vmul.f32 %v800, %v812
        %v815 = vmul.f32 %v801, %v813
        %v817 = vlaneseq
        %v818 = vshrl.u32 %v817, 7
        %v819 = vsub.s32 0, %v818
        %v820 = vrot.slane %v791, %v819
        %v822 = vmul.f32 %v814, %v820
        %v823 = vmul.f32 %v815, %v820
        %v825 = vlaneseq
        %v826 = vshrl.u32 %v825, 7
        %v827 = vsub.s32 0, %v826
        %v828 = vrot.slane %v792, %v827
        %v830 = vadd.f32 %v822, %v828
        %v831 = vadd.f32 %v823, %v828
        %v832 = vpack.c.bf16 %v831, %v830
        %v833 = vld [vmem:[%s759] sm:$0xff]
        %v834 = vld [vmem:[%s759 + $0x8] sm:$0xf]
        %v835 = vld [vmem:[%s759 + $0xc] sm:$0xff]
        %v836 = vld [vmem:[%s759 + $0x14] sm:$0xf]
        %v837 = vld [vmem:[%s759 + $0x18] sm:$0xff]
        %v838 = vld [vmem:[%s759 + $0x20] sm:$0xf]
        %v839 = vld [vmem:[%s759 + $0x24] sm:$0xff]
        %v840 = vld [vmem:[%s759 + $0x2c] sm:$0xf]
        %v841 = vld [vmem:[%s759 + $0x30] sm:$0xff]
        %v842 = vld [vmem:[%s759 + $0x38] sm:$0xf]
        %v843 = vld [vmem:[%s759 + $0x3c] sm:$0xff]
        %v844 = vld [vmem:[%s759 + $0x44] sm:$0xf]
        %v845 = vld [vmem:[%s759 + $0x48] sm:$0xff]
        %v846 = vld [vmem:[%s759 + $0x50] sm:$0xf]
        %v847 = vld [vmem:[%s759 + $0x54] sm:$0xff]
        %v848 = vld [vmem:[%s759 + $0x5c] sm:$0xf]
        %v849 = vld [vmem:[%s759 + $0x60] sm:$0xff]
        %v850 = vld [vmem:[%s759 + $0x68] sm:$0xf]
        %v851 = vld [vmem:[%s759 + $0x6c] sm:$0xff]
        %v852 = vld [vmem:[%s759 + $0x74] sm:$0xf]
        %v853 = vld [vmem:[%s759 + $0x78] sm:$0xff]
        %v854 = vld [vmem:[%s759 + $0x80] sm:$0xf]
        %v855 = vld [vmem:[%s759 + $0x84] sm:$0xff]
        %v856 = vld [vmem:[%s759 + $0x8c] sm:$0xf]
        %v857 = vld [vmem:[%s759 + $0x90] sm:$0xff]
        %v858 = vld [vmem:[%s759 + $0x98] sm:$0xf]
        %v859 = vld [vmem:[%s759 + $0x9c] sm:$0xff]
        %v860 = vld [vmem:[%s759 + $0xa4] sm:$0xf]
        %v861 = vld [vmem:[%s759 + $0xa8] sm:$0xff]
        %v862 = vld [vmem:[%s759 + $0xb0] sm:$0xf]
        %v863 = vld [vmem:[%s759 + $0xb4] sm:$0xff]
        %v864 = vld [vmem:[%s759 + $0xbc] sm:$0xf]
        %v865 = vld [vmem:[%s763] sm:$0x7]
        %v867 = vlaneseq
        %v868 = vshrl.u32 %v867, 7
        %v869 = vsub.s32 0, %v868
        %v870 = vrot.slane %v865, %v869
        %v871 = vlaneseq
        %v872 = vshrl.u32 %v871, 7
        %v873 = vsub.s32 1, %v872
        %v874 = vrot.slane %v865, %v873
        %v875 = vlaneseq
        %v876 = vshrl.u32 %v875, 7
        %v877 = vsub.s32 2, %v876
        %v878 = vrot.slane %v865, %v877
        %v914 = vunpack.c.l.b16 %v833
        %v915 = vunpack.c.h.b16 %v833
        %v916 = vunpack.c.l.b16 %v834
        %v917 = vunpack.c.l.b16 %v835
        %v918 = vunpack.c.h.b16 %v835
        %v919 = vunpack.c.l.b16 %v836
        %v920 = vunpack.c.l.b16 %v837
        %v921 = vunpack.c.h.b16 %v837
        %v922 = vunpack.c.l.b16 %v838
        %v923 = vunpack.c.l.b16 %v839
        %v924 = vunpack.c.h.b16 %v839
        %v925 = vunpack.c.l.b16 %v840
        %v926 = vunpack.c.l.b16 %v841
        %v927 = vunpack.c.h.b16 %v841
        %v928 = vunpack.c.l.b16 %v842
        %v929 = vunpack.c.l.b16 %v843
        %v930 = vunpack.c.h.b16 %v843
        %v931 = vunpack.c.l.b16 %v844
        %v932 = vunpack.c.l.b16 %v845
        %v933 = vunpack.c.h.b16 %v845
        %v934 = vunpack.c.l.b16 %v846
        %v935 = vunpack.c.l.b16 %v847
        %v936 = vunpack.c.h.b16 %v847
        %v937 = vunpack.c.l.b16 %v848
        %v938 = vunpack.c.l.b16 %v849
        %v939 = vunpack.c.h.b16 %v849
        %v940 = vunpack.c.l.b16 %v850
        %v941 = vunpack.c.l.b16 %v851
        %v942 = vunpack.c.h.b16 %v851
        %v943 = vunpack.c.l.b16 %v852
        %v944 = vunpack.c.l.b16 %v853
        %v945 = vunpack.c.h.b16 %v853
        %v946 = vunpack.c.l.b16 %v854
        %v947 = vunpack.c.l.b16 %v855
        %v948 = vunpack.c.h.b16 %v855
        %v949 = vunpack.c.l.b16 %v856
        %v950 = vunpack.c.l.b16 %v857
        %v951 = vunpack.c.h.b16 %v857
        %v952 = vunpack.c.l.b16 %v858
        %v953 = vunpack.c.l.b16 %v859
        %v954 = vunpack.c.h.b16 %v859
        %v955 = vunpack.c.l.b16 %v860
        %v956 = vunpack.c.l.b16 %v861
        %v957 = vunpack.c.h.b16 %v861
        %v958 = vunpack.c.l.b16 %v862
        %v959 = vunpack.c.l.b16 %v863
        %v960 = vunpack.c.h.b16 %v863
        %v961 = vunpack.c.l.b16 %v864
        %v962 = vpack.c.b16 %v917, %v914
        %v963 = vpack.c.b16 %v918, %v915
        %v964 = vpack.c.b16 %v919, %v916
        %v965 = vpack.c.b16 %v923, %v920
        %v966 = vpack.c.b16 %v924, %v921
        %v967 = vpack.c.b16 %v925, %v922
        %v968 = vpack.c.b16 %v929, %v926
        %v969 = vpack.c.b16 %v930, %v927
        %v970 = vpack.c.b16 %v931, %v928
        %v971 = vpack.c.b16 %v935, %v932
        %v972 = vpack.c.b16 %v936, %v933
        %v973 = vpack.c.b16 %v937, %v934
        %v974 = vpack.c.b16 %v941, %v938
        %v975 = vpack.c.b16 %v942, %v939
        %v976 = vpack.c.b16 %v943, %v940
        %v977 = vpack.c.b16 %v947, %v944
        %v978 = vpack.c.b16 %v948, %v945
        %v979 = vpack.c.b16 %v949, %v946
        %v980 = vpack.c.b16 %v953, %v950
        %v981 = vpack.c.b16 %v954, %v951
        %v982 = vpack.c.b16 %v955, %v952
        %v983 = vpack.c.b16 %v959, %v956
        %v984 = vpack.c.b16 %v960, %v957
        %v985 = vpack.c.b16 %v961, %v958
        %1010 = vmatprep.subr.bf16.mxu0 %v963
        %1011 = vmatpush1.bf16.msra.mxu0 %v962
        %1012 = vmatprep.subr.bf16.mxu0 %v966
        %1013 = vmatpush1.bf16.msra.mxu0 %v965
        %1014 = vmatprep.subr.bf16.mxu0 %v969
        %1015 = vmatpush1.bf16.msra.mxu0 %v968
        %1016 = vmatprep.subr.bf16.mxu0 %v972
        %1017 = vmatpush1.bf16.msra.mxu0 %v971
        %1018 = vmatprep.subr.bf16.mxu0 %v975
        %1019 = vmatpush1.bf16.msra.mxu0 %v974
        %1020 = vmatprep.subr.bf16.mxu0 %v978
        %1021 = vmatpush1.bf16.msra.mxu0 %v977
        %1022 = vmatprep.subr.bf16.mxu0 %v981
        %1023 = vmatpush1.bf16.msra.mxu0 %v980
        %1024 = vmatprep.subr.bf16.mxu0 %v984
        %1025 = vmatpush1.bf16.msra.mxu0 %v983
        %1026 = vmatprep.subr.bf16.mxu0 0
        %1027 = vmatpush1.bf16.msra.mxu0 0
        %1028 = vmatprep.subr.bf16.mxu0 0
        %1029 = vmatpush1.bf16.msra.mxu0 0
        %1030 = vmatprep.subr.bf16.mxu0 0
        %1031 = vmatpush1.bf16.msra.mxu0 0
        %1032 = vmatprep.subr.bf16.mxu0 0
        %1033 = vmatpush1.bf16.msra.mxu0 0
        %1034 = vmatprep.subr.bf16.mxu0 0
        %1035 = vmatpush1.bf16.msra.mxu0 0
        %1036 = vmatprep.subr.bf16.mxu0 0
        %1037 = vmatpush1.bf16.msra.mxu0 0
        %1038 = vmatprep.subr.bf16.mxu0 0
        %1039 = vmatpush1.bf16.msra.mxu0 0
        %1040 = vmatprep.subr.bf16.mxu0 0
        %1041 = vmatpush1.bf16.msra.mxu0 0
        %1042 = vmatprep.mubr.bf16.mxu0 0
        %1043 = vmatmul.mubr.bf16.gmra.mrb[0].mxu0 %v832
        %v1044 = vpop.f32.mrb[0].mxu0
        %v1045 = vadd.f32 %v870, %v1044
        %v1046 = vpop.f32.mrb[0].mxu0
        %v1047 = vadd.f32 %v874, %v1046
        %v1048 = vpop.f32.mrb[0].mxu0
        %v1049 = vadd.f32 %v870, %v1048
        %v1050 = vpop.f32.mrb[0].mxu0
        %v1051 = vadd.f32 %v874, %v1050
        %1052 = vdwg.mxu0
        %1053 = vmatprep.subr.bf16.mxu0 0
        %1054 = vmatpush1.bf16.msra.mxu0 %v964
        %1055 = vmatprep.subr.bf16.mxu0 0
        %1056 = vmatpush1.bf16.msra.mxu0 %v967
        %1057 = vmatprep.subr.bf16.mxu0 0
        %1058 = vmatpush1.bf16.msra.mxu0 %v970
        %1059 = vmatprep.subr.bf16.mxu0 0
        %1060 = vmatpush1.bf16.msra.mxu0 %v973
        %1061 = vmatprep.subr.bf16.mxu0 0
        %1062 = vmatpush1.bf16.msra.mxu0 %v976
        %1063 = vmatprep.subr.bf16.mxu0 0
        %1064 = vmatpush1.bf16.msra.mxu0 %v979
        %1065 = vmatprep.subr.bf16.mxu0 0
        %1066 = vmatpush1.bf16.msra.mxu0 %v982
        %1067 = vmatprep.subr.bf16.mxu0 0
        %1068 = vmatpush1.bf16.msra.mxu0 %v985
        %1069 = vmatprep.subr.bf16.mxu0 0
        %1070 = vmatpush1.bf16.msra.mxu0 0
        %1071 = vmatprep.subr.bf16.mxu0 0
        %1072 = vmatpush1.bf16.msra.mxu0 0
        %1073 = vmatprep.subr.bf16.mxu0 0
        %1074 = vmatpush1.bf16.msra.mxu0 0
        %1075 = vmatprep.subr.bf16.mxu0 0
        %1076 = vmatpush1.bf16.msra.mxu0 0
        %1077 = vmatprep.subr.bf16.mxu0 0
        %1078 = vmatpush1.bf16.msra.mxu0 0
        %1079 = vmatprep.subr.bf16.mxu0 0
        %1080 = vmatpush1.bf16.msra.mxu0 0
        %1081 = vmatprep.subr.bf16.mxu0 0
        %1082 = vmatpush1.bf16.msra.mxu0 0
        %1083 = vmatprep.subr.bf16.mxu0 0
        %1084 = vmatpush1.bf16.msra.mxu0 0
        %1085 = vmatprep.mubr.bf16.mxu0 0
        %1086 = vmatmul.mubr.bf16.gmra.mrb[0].mxu0 %v832
        %v1087 = vpop.f32.mrb[0].mxu0
        %v1088 = vadd.f32 %v878, %v1087
        %v1089 = vpop.f32.mrb[0].mxu0
        %v1090 = vpop.f32.mrb[0].mxu0
        %v1091 = vadd.f32 %v878, %v1090
        %v1092 = vpop.f32.mrb[0].mxu0
        %1093 = vdwg.mxu0
        %v1094 = vmul.f32 %v1045, 0.17677669
        %v1095 = vmul.f32 %v1049, 0.17677669
        %v1096 = vpack.c.bf16 %v1095, %v1094
        %1097 = vst [vmem:[#allocation4] sm:$0xff] %v1096
        %v1098 = vpack.c.bf16 %v1051, %v1047
        %1099 = vst [vmem:[#allocation5] sm:$0xff] %v1098
        %v1100 = vpack.c.bf16 %v1091, %v1088
        %1101 = vst [vmem:[#allocation6] sm:$0xff] %v1100
        %v1102 = vlaneseq
        %v1103 = vshrl.u32 %v1102, 7
        %v1104 = vadd.s32 %v1103, 8
        %v1105 = vlaneseq
        %v1106 = vand.u32 %v1105, 127
        %vm1107 = vcmp.gt.s32.totalorder %v1106, %v1103
        %vm1108 = vcmp.gt.s32.totalorder %v1106, %v1104
        %v1109 = vld [vmem:[#allocation4] sm:$0xff]
        %v1110 = vld [vmem:[#allocation5] sm:$0xff]
        %v1111 = vld [vmem:[#allocation6] sm:$0xff]
        %vm1112 = vcmask 261120
        %v1114 = vsel %vm1112, %v1109, 0
        %v1117 = vsel %vm1112, %v1110, 0
        %1119 = vmatprep.subr.bf16.mxu0 0
        %1120 = vmatpush1.bf16.xpose.msra.mxu0 %v1117
        %1121 = vmatprep.subr.bf16.mxu0 0
        %1122 = vmatpush1.bf16.xpose.msra.mxu0 0
        %1123 = vmatprep.subr.bf16.mxu0 0
        %1124 = vmatpush1.bf16.xpose.msra.mxu0 0
        %1125 = vmatprep.subr.bf16.mxu0 0
        %1126 = vmatpush1.bf16.xpose.msra.mxu0 0
        %1127 = vmatprep.subr.bf16.mxu0 0
        %1128 = vmatpush1.bf16.xpose.msra.mxu0 0
        %1129 = vmatprep.subr.bf16.mxu0 0
        %1130 = vmatpush1.bf16.xpose.msra.mxu0 0
        %1131 = vmatprep.subr.bf16.mxu0 0
        %1132 = vmatpush1.bf16.xpose.msra.mxu0 0
        %1133 = vmatprep.subr.bf16.mxu0 0
        %1134 = vmatpush1.bf16.xpose.msra.mxu0 0
        %1135 = vmatprep.subr.bf16.mxu0 0
        %1136 = vmatpush1.bf16.xpose.msra.mxu0 0
        %1137 = vmatprep.subr.bf16.mxu0 0
        %1138 = vmatpush1.bf16.xpose.msra.mxu0 0
        %1139 = vmatprep.subr.bf16.mxu0 0
        %1140 = vmatpush1.bf16.xpose.msra.mxu0 0
        %1141 = vmatprep.subr.bf16.mxu0 0
        %1142 = vmatpush1.bf16.xpose.msra.mxu0 0
        %1143 = vmatprep.subr.bf16.mxu0 0
        %1144 = vmatpush1.bf16.xpose.msra.mxu0 0
        %1145 = vmatprep.subr.bf16.mxu0 0
        %1146 = vmatpush1.bf16.xpose.msra.mxu0 0
        %1147 = vmatprep.subr.bf16.mxu0 0
        %1148 = vmatpush1.bf16.xpose.msra.mxu0 0
        %1149 = vmatprep.subr.bf16.mxu0 0
        %1150 = vmatpush1.bf16.xpose.msra.mxu0 0
        %1151 = vmatprep.mubr.bf16.mxu0 0
        %1152 = vmatmul.mubr.bf16.gmra.mrb[0].mxu0 %v1114
        %v1153 = vpop.f32.mrb[0].mxu0
        %v1154 = vadd.f32 0.0, %v1153
        %v1155 = vpop.f32.mrb[0].mxu0
        %v1156 = vpop.f32.mrb[0].mxu0
        %v1157 = vadd.f32 0.0, %v1156
        %v1158 = vpop.f32.mrb[0].mxu0
        %1159 = vdwg.mxu0
        %v1160 = vsel %vm1107, -1e+30, %v1154
        %v1161 = vsel %vm1108, -1e+30, %v1157
        %vm1162 = vcmask 130048
        %v1163 = vsel %vm1162, %v1160, -inf
        %1164 = vmax.xlane.f32.xlu0 %v1163
        %v1165 = vpop.xlane.xlu0 %1164
        %v1166 = vsel %vm1162, %v1161, -inf
        %1167 = vmax.xlane.f32.xlu0 %v1166
        %v1168 = vpop.xlane.xlu0 %1167
        %v1169 = vsub.f32 %v1160, %v1165
        %v1170 = vsub.f32 %v1161, %v1168
        %v1171 = vmul.f32 %v1169, 1.442695
        %v1172 = vpow.pop %v1171
        %v1173 = vmul.f32 %v1170, 1.442695
        %v1174 = vpow.pop %v1173
        %v1175 = vsel %vm1162, %v1172, 0.0
        %1176 = vadd.xlane.f32.xlu0 %v1175
        %v1177 = vpop.xlane.xlu0 %1176
        %v1178 = vsel %vm1162, %v1174, 0.0
        %1179 = vadd.xlane.f32.xlu0 %v1178
        %v1180 = vpop.xlane.xlu0 %1179
        %v1181 = vrcp.pop %v1177
        %v1182 = vrcp.pop %v1180
        %v1183 = vpack.c.bf16 %v1174, %v1172
        %v1185 = vsel %vm1162, %v1183, 0
        %1187 = vmatprep.subr.bf16.mxu0 0
        %1188 = vmatpush1.bf16.msra.mxu0 %v1111
        %1189 = vmatprep.subr.bf16.mxu0 0
        %1190 = vmatpush1.bf16.msra.mxu0 0
        %1191 = vmatprep.subr.bf16.mxu0 0
        %1192 = vmatpush1.bf16.msra.mxu0 0
        %1193 = vmatprep.subr.bf16.mxu0 0
        %1194 = vmatpush1.bf16.msra.mxu0 0
        %1195 = vmatprep.subr.bf16.mxu0 0
        %1196 = vmatpush1.bf16.msra.mxu0 0
        %1197 = vmatprep.subr.bf16.mxu0 0
        %1198 = vmatpush1.bf16.msra.mxu0 0
        %1199 = vmatprep.subr.bf16.mxu0 0
        %1200 = vmatpush1.bf16.msra.mxu0 0
        %1201 = vmatprep.subr.bf16.mxu0 0
        %1202 = vmatpush1.bf16.msra.mxu0 0
        %1203 = vmatprep.subr.bf16.mxu0 0
        %1204 = vmatpush1.bf16.msra.mxu0 0
        %1205 = vmatprep.subr.bf16.mxu0 0
        %1206 = vmatpush1.bf16.msra.mxu0 0
        %1207 = vmatprep.subr.bf16.mxu0 0
        %1208 = vmatpush1.bf16.msra.mxu0 0
        %1209 = vmatprep.subr.bf16.mxu0 0
        %1210 = vmatpush1.bf16.msra.mxu0 0
        %1211 = vmatprep.subr.bf16.mxu0 0
        %1212 = vmatpush1.bf16.msra.mxu0 0
        %1213 = vmatprep.subr.bf16.mxu0 0
        %1214 = vmatpush1.bf16.msra.mxu0 0
        %1215 = vmatprep.subr.bf16.mxu0 0
        %1216 = vmatpush1.bf16.msra.mxu0 0
        %1217 = vmatprep.subr.bf16.mxu0 0
        %1218 = vmatpush1.bf16.msra.mxu0 0
        %1219 = vmatprep.mubr.bf16.mxu0 0
        %1220 = vmatmul.mubr.bf16.gmra.mrb[0].mxu0 %v1185
        %v1221 = vpop.f32.mrb[0].mxu0
        %v1222 = vadd.f32 0.0, %v1221
        %v1223 = vpop.f32.mrb[0].mxu0
        %v1224 = vpop.f32.mrb[0].mxu0
        %v1225 = vadd.f32 0.0, %v1224
        %v1226 = vpop.f32.mrb[0].mxu0
        %1227 = vdwg.mxu0
        %v1228 = vmul.f32 %v1222, %v1181
        %v1229 = vmul.f32 %v1225, %v1182
        %v1230 = vpack.c.bf16 %v1229, %v1228
        %1232 = vrot.lane.b32.xlu0 %v1109, 96
        %v1233 = vpop.permute.xlu0 %1232
        %1235 = vrot.lane.b32.xlu0 %v1110, 96
        %v1236 = vpop.permute.xlu0 %1235
        %v1238 = vsel %vm1112, %v1233, 0
        %v1241 = vsel %vm1112, %v1236, 0
        %1243 = vmatprep.subr.bf16.mxu0 0
        %1244 = vmatpush1.bf16.xpose.msra.mxu0 %v1241
        %1245 = vmatprep.subr.bf16.mxu0 0
        %1246 = vmatpush1.bf16.xpose.msra.mxu0 0
        %1247 = vmatprep.subr.bf16.mxu0 0
        %1248 = vmatpush1.bf16.xpose.msra.mxu0 0
        %1249 = vmatprep.subr.bf16.mxu0 0
        %1250 = vmatpush1.bf16.xpose.msra.mxu0 0
        %1251 = vmatprep.subr.bf16.mxu0 0
        %1252 = vmatpush1.bf16.xpose.msra.mxu0 0
        %1253 = vmatprep.subr.bf16.mxu0 0
        %1254 = vmatpush1.bf16.xpose.msra.mxu0 0
        %1255 = vmatprep.subr.bf16.mxu0 0
        %1256 = vmatpush1.bf16.xpose.msra.mxu0 0
        %1257 = vmatprep.subr.bf16.mxu0 0
        %1258 = vmatpush1.bf16.xpose.msra.mxu0 0
        %1259 = vmatprep.subr.bf16.mxu0 0
        %1260 = vmatpush1.bf16.xpose.msra.mxu0 0
        %1261 = vmatprep.subr.bf16.mxu0 0
        %1262 = vmatpush1.bf16.xpose.msra.mxu0 0
        %1263 = vmatprep.subr.bf16.mxu0 0
        %1264 = vmatpush1.bf16.xpose.msra.mxu0 0
        %1265 = vmatprep.subr.bf16.mxu0 0
        %1266 = vmatpush1.bf16.xpose.msra.mxu0 0
        %1267 = vmatprep.subr.bf16.mxu0 0
        %1268 = vmatpush1.bf16.xpose.msra.mxu0 0
        %1269 = vmatprep.subr.bf16.mxu0 0
        %1270 = vmatpush1.bf16.xpose.msra.mxu0 0
        %1271 = vmatprep.subr.bf16.mxu0 0
        %1272 = vmatpush1.bf16.xpose.msra.mxu0 0
        %1273 = vmatprep.subr.bf16.mxu0 0
        %1274 = vmatpush1.bf16.xpose.msra.mxu0 0
        %1275 = vmatprep.mubr.bf16.mxu0 0
        %1276 = vmatmul.mubr.bf16.gmra.mrb[0].mxu0 %v1238
        %v1277 = vpop.f32.mrb[0].mxu0
        %v1278 = vadd.f32 0.0, %v1277
        %v1279 = vpop.f32.mrb[0].mxu0
        %v1280 = vpop.f32.mrb[0].mxu0
        %v1281 = vadd.f32 0.0, %v1280
        %v1282 = vpop.f32.mrb[0].mxu0
        %1283 = vdwg.mxu0
        %v1284 = vsel %vm1107, -1e+30, %v1278
        %v1285 = vsel %vm1108, -1e+30, %v1281
        %v1286 = vsel %vm1162, %v1284, -inf
        %1287 = vmax.xlane.f32.xlu0 %v1286
        %v1288 = vpop.xlane.xlu0 %1287
        %v1289 = vsel %vm1162, %v1285, -inf
        %1290 = vmax.xlane.f32.xlu0 %v1289
        %v1291 = vpop.xlane.xlu0 %1290
        %v1292 = vsub.f32 %v1284, %v1288
        %v1293 = vsub.f32 %v1285, %v1291
        %v1294 = vmul.f32 %v1292, 1.442695
        %v1295 = vpow.pop %v1294
        %v1296 = vmul.f32 %v1293, 1.442695
        %v1297 = vpow.pop %v1296
        %v1298 = vsel %vm1162, %v1295, 0.0
        %1299 = vadd.xlane.f32.xlu0 %v1298
        %v1300 = vpop.xlane.xlu0 %1299
        %v1301 = vsel %vm1162, %v1297, 0.0
        %1302 = vadd.xlane.f32.xlu0 %v1301
        %v1303 = vpop.xlane.xlu0 %1302
        %v1304 = vrcp.pop %v1300
        %v1305 = vrcp.pop %v1303
        %v1306 = vpack.c.bf16 %v1297, %v1295
        %1308 = vrot.lane.b32.xlu0 %v1111, 96
        %v1309 = vpop.permute.xlu0 %1308
        %v1312 = vsel %vm1162, %v1306, 0
        %1314 = vmatprep.subr.bf16.mxu0 0
        %1315 = vmatpush1.bf16.msra.mxu0 %v1309
        %1316 = vmatprep.subr.bf16.mxu0 0
        %1317 = vmatpush1.bf16.msra.mxu0 0
        %1318 = vmatprep.subr.bf16.mxu0 0
        %1319 = vmatpush1.bf16.msra.mxu0 0
        %1320 = vmatprep.subr.bf16.mxu0 0
        %1321 = vmatpush1.bf16.msra.mxu0 0
        %1322 = vmatprep.subr.bf16.mxu0 0
        %1323 = vmatpush1.bf16.msra.mxu0 0
        %1324 = vmatprep.subr.bf16.mxu0 0
        %1325 = vmatpush1.bf16.msra.mxu0 0
        %1326 = vmatprep.subr.bf16.mxu0 0
        %1327 = vmatpush1.bf16.msra.mxu0 0
        %1328 = vmatprep.subr.bf16.mxu0 0
        %1329 = vmatpush1.bf16.msra.mxu0 0
        %1330 = vmatprep.subr.bf16.mxu0 0
        %1331 = vmatpush1.bf16.msra.mxu0 0
        %1332 = vmatprep.subr.bf16.mxu0 0
        %1333 = vmatpush1.bf16.msra.mxu0 0
        %1334 = vmatprep.subr.bf16.mxu0 0
        %1335 = vmatpush1.bf16.msra.mxu0 0
        %1336 = vmatprep.subr.bf16.mxu0 0
        %1337 = vmatpush1.bf16.msra.mxu0 0
        %1338 = vmatprep.subr.bf16.mxu0 0
        %1339 = vmatpush1.bf16.msra.mxu0 0
        %1340 = vmatprep.subr.bf16.mxu0 0
        %1341 = vmatpush1.bf16.msra.mxu0 0
        %1342 = vmatprep.subr.bf16.mxu0 0
        %1343 = vmatpush1.bf16.msra.mxu0 0
        %1344 = vmatprep.subr.bf16.mxu0 0
        %1345 = vmatpush1.bf16.msra.mxu0 0
        %1346 = vmatprep.mubr.bf16.mxu0 0
        %1347 = vmatmul.mubr.bf16.gmra.mrb[0].mxu0 %v1312
        %v1348 = vpop.f32.mrb[0].mxu0
        %v1349 = vadd.f32 0.0, %v1348
        %v1350 = vpop.f32.mrb[0].mxu0
        %v1351 = vpop.f32.mrb[0].mxu0
        %v1352 = vadd.f32 0.0, %v1351
        %v1353 = vpop.f32.mrb[0].mxu0
        %1354 = vdwg.mxu0
        %v1355 = vmul.f32 %v1349, %v1304
        %v1356 = vmul.f32 %v1352, %v1305
        %v1357 = vpack.c.bf16 %v1356, %v1355
        %1358 = vrot.lane.b32.xlu0 %v1109, 64
        %v1359 = vpop.permute.xlu0 %1358
        %1360 = vrot.lane.b32.xlu0 %v1110, 64
        %v1361 = vpop.permute.xlu0 %1360
        %v1363 = vsel %vm1112, %v1359, 0
        %v1366 = vsel %vm1112, %v1361, 0
        %1368 = vmatprep.subr.bf16.mxu0 0
        %1369 = vmatpush1.bf16.xpose.msra.mxu0 %v1366
        %1370 = vmatprep.subr.bf16.mxu0 0
        %1371 = vmatpush1.bf16.xpose.msra.mxu0 0
        %1372 = vmatprep.subr.bf16.mxu0 0
        %1373 = vmatpush1.bf16.xpose.msra.mxu0 0
        %1374 = vmatprep.subr.bf16.mxu0 0
        %1375 = vmatpush1.bf16.xpose.msra.mxu0 0
        %1376 = vmatprep.subr.bf16.mxu0 0
        %1377 = vmatpush1.bf16.xpose.msra.mxu0 0
        %1378 = vmatprep.subr.bf16.mxu0 0
        %1379 = vmatpush1.bf16.xpose.msra.mxu0 0
        %1380 = vmatprep.subr.bf16.mxu0 0
        %1381 = vmatpush1.bf16.xpose.msra.mxu0 0
        %1382 = vmatprep.subr.bf16.mxu0 0
        %1383 = vmatpush1.bf16.xpose.msra.mxu0 0
        %1384 = vmatprep.subr.bf16.mxu0 0
        %1385 = vmatpush1.bf16.xpose.msra.mxu0 0
        %1386 = vmatprep.subr.bf16.mxu0 0
        %1387 = vmatpush1.bf16.xpose.msra.mxu0 0
        %1388 = vmatprep.subr.bf16.mxu0 0
        %1389 = vmatpush1.bf16.xpose.msra.mxu0 0
        %1390 = vmatprep.subr.bf16.mxu0 0
        %1391 = vmatpush1.bf16.xpose.msra.mxu0 0
        %1392 = vmatprep.subr.bf16.mxu0 0
        %1393 = vmatpush1.bf16.xpose.msra.mxu0 0
        %1394 = vmatprep.subr.bf16.mxu0 0
        %1395 = vmatpush1.bf16.xpose.msra.mxu0 0
        %1396 = vmatprep.subr.bf16.mxu0 0
        %1397 = vmatpush1.bf16.xpose.msra.mxu0 0
        %1398 = vmatprep.subr.bf16.mxu0 0
        %1399 = vmatpush1.bf16.xpose.msra.mxu0 0
        %1400 = vmatprep.mubr.bf16.mxu0 0
        %1401 = vmatmul.mubr.bf16.gmra.mrb[0].mxu0 %v1363
        %v1402 = vpop.f32.mrb[0].mxu0
        %v1403 = vadd.f32 0.0, %v1402
        %v1404 = vpop.f32.mrb[0].mxu0
        %v1405 = vpop.f32.mrb[0].mxu0
        %v1406 = vadd.f32 0.0, %v1405
        %v1407 = vpop.f32.mrb[0].mxu0
        %1408 = vdwg.mxu0
        %v1409 = vsel %vm1107, -1e+30, %v1403
        %v1410 = vsel %vm1108, -1e+30, %v1406
        %v1411 = vsel %vm1162, %v1409, -inf
        %1412 = vmax.xlane.f32.xlu0 %v1411
        %v1413 = vpop.xlane.xlu0 %1412
        %v1414 = vsel %vm1162, %v1410, -inf
        %1415 = vmax.xlane.f32.xlu0 %v1414
        %v1416 = vpop.xlane.xlu0 %1415
        %v1417 = vsub.f32 %v1409, %v1413
        %v1418 = vsub.f32 %v1410, %v1416
        %v1419 = vmul.f32 %v1417, 1.442695
        %v1420 = vpow.pop %v1419
        %v1421 = vmul.f32 %v1418, 1.442695
        %v1422 = vpow.pop %v1421
        %v1423 = vsel %vm1162, %v1420, 0.0
        %1424 = vadd.xlane.f32.xlu0 %v1423
        %v1425 = vpop.xlane.xlu0 %1424
        %v1426 = vsel %vm1162, %v1422, 0.0
        %1427 = vadd.xlane.f32.xlu0 %v1426
        %v1428 = vpop.xlane.xlu0 %1427
        %v1429 = vrcp.pop %v1425
        %v1430 = vrcp.pop %v1428
        %v1431 = vpack.c.bf16 %v1422, %v1420
        %1432 = vrot.lane.b32.xlu0 %v1111, 64
        %v1433 = vpop.permute.xlu0 %1432
        %v1436 = vsel %vm1162, %v1431, 0
        %1438 = vmatprep.subr.bf16.mxu0 0
        %1439 = vmatpush1.bf16.msra.mxu0 %v1433
        %1440 = vmatprep.subr.bf16.mxu0 0
        %1441 = vmatpush1.bf16.msra.mxu0 0
        %1442 = vmatprep.subr.bf16.mxu0 0
        %1443 = vmatpush1.bf16.msra.mxu0 0
        %1444 = vmatprep.subr.bf16.mxu0 0
        %1445 = vmatpush1.bf16.msra.mxu0 0
        %1446 = vmatprep.subr.bf16.mxu0 0
        %1447 = vmatpush1.bf16.msra.mxu0 0
        %1448 = vmatprep.subr.bf16.mxu0 0
        %1449 = vmatpush1.bf16.msra.mxu0 0
        %1450 = vmatprep.subr.bf16.mxu0 0
        %1451 = vmatpush1.bf16.msra.mxu0 0
        %1452 = vmatprep.subr.bf16.mxu0 0
        %1453 = vmatpush1.bf16.msra.mxu0 0
        %1454 = vmatprep.subr.bf16.mxu0 0
        %1455 = vmatpush1.bf16.msra.mxu0 0
        %1456 = vmatprep.subr.bf16.mxu0 0
        %1457 = vmatpush1.bf16.msra.mxu0 0
        %1458 = vmatprep.subr.bf16.mxu0 0
        %1459 = vmatpush1.bf16.msra.mxu0 0
        %1460 = vmatprep.subr.bf16.mxu0 0
        %1461 = vmatpush1.bf16.msra.mxu0 0
        %1462 = vmatprep.subr.bf16.mxu0 0
        %1463 = vmatpush1.bf16.msra.mxu0 0
        %1464 = vmatprep.subr.bf16.mxu0 0
        %1465 = vmatpush1.bf16.msra.mxu0 0
        %1466 = vmatprep.subr.bf16.mxu0 0
        %1467 = vmatpush1.bf16.msra.mxu0 0
        %1468 = vmatprep.subr.bf16.mxu0 0
        %1469 = vmatpush1.bf16.msra.mxu0 0
        %1470 = vmatprep.mubr.bf16.mxu0 0
        %1471 = vmatmul.mubr.bf16.gmra.mrb[0].mxu0 %v1436
        %v1472 = vpop.f32.mrb[0].mxu0
        %v1473 = vadd.f32 0.0, %v1472
        %v1474 = vpop.f32.mrb[0].mxu0
        %v1475 = vpop.f32.mrb[0].mxu0
        %v1476 = vadd.f32 0.0, %v1475
        %v1477 = vpop.f32.mrb[0].mxu0
        %1478 = vdwg.mxu0
        %v1479 = vmul.f32 %v1473, %v1429
        %v1480 = vmul.f32 %v1476, %v1430
        %v1481 = vpack.c.bf16 %v1480, %v1479
        %1482 = vrot.lane.b32.xlu0 %v1109, 32
        %v1483 = vpop.permute.xlu0 %1482
        %1484 = vrot.lane.b32.xlu0 %v1110, 32
        %v1485 = vpop.permute.xlu0 %1484
        %v1487 = vsel %vm1112, %v1483, 0
        %v1490 = vsel %vm1112, %v1485, 0
        %1492 = vmatprep.subr.bf16.mxu0 0
        %1493 = vmatpush1.bf16.xpose.msra.mxu0 %v1490
        %1494 = vmatprep.subr.bf16.mxu0 0
        %1495 = vmatpush1.bf16.xpose.msra.mxu0 0
        %1496 = vmatprep.subr.bf16.mxu0 0
        %1497 = vmatpush1.bf16.xpose.msra.mxu0 0
        %1498 = vmatprep.subr.bf16.mxu0 0
        %1499 = vmatpush1.bf16.xpose.msra.mxu0 0
        %1500 = vmatprep.subr.bf16.mxu0 0
        %1501 = vmatpush1.bf16.xpose.msra.mxu0 0
        %1502 = vmatprep.subr.bf16.mxu0 0
        %1503 = vmatpush1.bf16.xpose.msra.mxu0 0
        %1504 = vmatprep.subr.bf16.mxu0 0
        %1505 = vmatpush1.bf16.xpose.msra.mxu0 0
        %1506 = vmatprep.subr.bf16.mxu0 0
        %1507 = vmatpush1.bf16.xpose.msra.mxu0 0
        %1508 = vmatprep.subr.bf16.mxu0 0
        %1509 = vmatpush1.bf16.xpose.msra.mxu0 0
        %1510 = vmatprep.subr.bf16.mxu0 0
        %1511 = vmatpush1.bf16.xpose.msra.mxu0 0
        %1512 = vmatprep.subr.bf16.mxu0 0
        %1513 = vmatpush1.bf16.xpose.msra.mxu0 0
        %1514 = vmatprep.subr.bf16.mxu0 0
        %1515 = vmatpush1.bf16.xpose.msra.mxu0 0
        %1516 = vmatprep.subr.bf16.mxu0 0
        %1517 = vmatpush1.bf16.xpose.msra.mxu0 0
        %1518 = vmatprep.subr.bf16.mxu0 0
        %1519 = vmatpush1.bf16.xpose.msra.mxu0 0
        %1520 = vmatprep.subr.bf16.mxu0 0
        %1521 = vmatpush1.bf16.xpose.msra.mxu0 0
        %1522 = vmatprep.subr.bf16.mxu0 0
        %1523 = vmatpush1.bf16.xpose.msra.mxu0 0
        %1524 = vmatprep.mubr.bf16.mxu0 0
        %1525 = vmatmul.mubr.bf16.gmra.mrb[0].mxu0 %v1487
        %v1526 = vpop.f32.mrb[0].mxu0
        %v1527 = vadd.f32 0.0, %v1526
        %v1528 = vpop.f32.mrb[0].mxu0
        %v1529 = vpop.f32.mrb[0].mxu0
        %v1530 = vadd.f32 0.0, %v1529
        %v1531 = vpop.f32.mrb[0].mxu0
        %1532 = vdwg.mxu0
        %v1533 = vsel %vm1107, -1e+30, %v1527
        %v1534 = vsel %vm1108, -1e+30, %v1530
        %v1535 = vsel %vm1162, %v1533, -inf
        %1536 = vmax.xlane.f32.xlu0 %v1535
        %v1537 = vpop.xlane.xlu0 %1536
        %v1538 = vsel %vm1162, %v1534, -inf
        %1539 = vmax.xlane.f32.xlu0 %v1538
        %v1540 = vpop.xlane.xlu0 %1539
        %v1541 = vsub.f32 %v1533, %v1537
        %v1542 = vsub.f32 %v1534, %v1540
        %v1543 = vmul.f32 %v1541, 1.442695
        %v1544 = vpow.pop %v1543
        %v1545 = vmul.f32 %v1542, 1.442695
        %v1546 = vpow.pop %v1545
        %v1547 = vsel %vm1162, %v1544, 0.0
        %1548 = vadd.xlane.f32.xlu0 %v1547
        %v1549 = vpop.xlane.xlu0 %1548
        %v1550 = vsel %vm1162, %v1546, 0.0
        %1551 = vadd.xlane.f32.xlu0 %v1550
        %v1552 = vpop.xlane.xlu0 %1551
        %v1553 = vrcp.pop %v1549
        %v1554 = vrcp.pop %v1552
        %v1555 = vpack.c.bf16 %v1546, %v1544
        %1556 = vrot.lane.b32.xlu0 %v1111, 32
        %v1557 = vpop.permute.xlu0 %1556
        %v1560 = vsel %vm1162, %v1555, 0
        %1562 = vmatprep.subr.bf16.mxu0 0
        %1563 = vmatpush1.bf16.msra.mxu0 %v1557
        %1564 = vmatprep.subr.bf16.mxu0 0
        %1565 = vmatpush1.bf16.msra.mxu0 0
        %1566 = vmatprep.subr.bf16.mxu0 0
        %1567 = vmatpush1.bf16.msra.mxu0 0
        %1568 = vmatprep.subr.bf16.mxu0 0
        %1569 = vmatpush1.bf16.msra.mxu0 0
        %1570 = vmatprep.subr.bf16.mxu0 0
        %1571 = vmatpush1.bf16.msra.mxu0 0
        %1572 = vmatprep.subr.bf16.mxu0 0
        %1573 = vmatpush1.bf16.msra.mxu0 0
        %1574 = vmatprep.subr.bf16.mxu0 0
        %1575 = vmatpush1.bf16.msra.mxu0 0
        %1576 = vmatprep.subr.bf16.mxu0 0
        %1577 = vmatpush1.bf16.msra.mxu0 0
        %1578 = vmatprep.subr.bf16.mxu0 0
        %1579 = vmatpush1.bf16.msra.mxu0 0
        %1580 = vmatprep.subr.bf16.mxu0 0
        %1581 = vmatpush1.bf16.msra.mxu0 0
        %1582 = vmatprep.subr.bf16.mxu0 0
        %1583 = vmatpush1.bf16.msra.mxu0 0
        %1584 = vmatprep.subr.bf16.mxu0 0
        %1585 = vmatpush1.bf16.msra.mxu0 0
        %1586 = vmatprep.subr.bf16.mxu0 0
        %1587 = vmatpush1.bf16.msra.mxu0 0
        %1588 = vmatprep.subr.bf16.mxu0 0
        %1589 = vmatpush1.bf16.msra.mxu0 0
        %1590 = vmatprep.subr.bf16.mxu0 0
        %1591 = vmatpush1.bf16.msra.mxu0 0
        %1592 = vmatprep.subr.bf16.mxu0 0
        %1593 = vmatpush1.bf16.msra.mxu0 0
        %1594 = vmatprep.mubr.bf16.mxu0 0
        %1595 = vmatmul.mubr.bf16.gmra.mrb[0].mxu0 %v1560
        %v1596 = vpop.f32.mrb[0].mxu0
        %v1597 = vadd.f32 0.0, %v1596
        %v1598 = vpop.f32.mrb[0].mxu0
        %v1599 = vpop.f32.mrb[0].mxu0
        %v1600 = vadd.f32 0.0, %v1599
        %v1601 = vpop.f32.mrb[0].mxu0
        %1602 = vdwg.mxu0
        %v1603 = vmul.f32 %v1597, %v1553
        %v1604 = vmul.f32 %v1600, %v1554
        %v1605 = vpack.c.bf16 %v1604, %v1603
        %1607 = vrot.lane.b32.xlu0 %v1357, 32
        %v1608 = vpop.permute.xlu0 %1607
        %1610 = vrot.lane.b32.xlu0 %v1481, 64
        %v1611 = vpop.permute.xlu0 %1610
        %1613 = vrot.lane.b32.xlu0 %v1605, 96
        %v1614 = vpop.permute.xlu0 %1613
        %v1617 = vsel %vm1112, %v1230, %v1608
        %vm1618 = vcmask 523264
        %v1620 = vsel %vm1618, %v1617, %v1611
        %vm1621 = vcmask 785408
        %v1623 = vsel %vm1621, %v1620, %v1614
        %1625 = vst [vmem:[#allocation3] sm:$0xff] %v1623
        %v1626 = vld [vmem:[#allocation3] sm:$0xff]
        %v1627 = vld [vmem:[%s638] sm:$0xf]
        %v1628 = vld [vmem:[%s638 + $0x4] sm:$0xf]
        %v1629 = vld [vmem:[%s638 + $0x8] sm:$0xf]
        %v1630 = vld [vmem:[%s638 + $0xc] sm:$0xf]
        %v1631 = vld [vmem:[%s638 + $0x10] sm:$0xf]
        %v1632 = vld [vmem:[%s638 + $0x14] sm:$0xf]
        %v1633 = vld [vmem:[%s638 + $0x18] sm:$0xf]
        %v1634 = vld [vmem:[%s638 + $0x1c] sm:$0xf]
        %v1635 = vld [vmem:[%s638 + $0x20] sm:$0xf]
        %v1636 = vld [vmem:[%s638 + $0x24] sm:$0xf]
        %v1637 = vld [vmem:[%s638 + $0x28] sm:$0xf]
        %v1638 = vld [vmem:[%s638 + $0x2c] sm:$0xf]
        %v1639 = vld [vmem:[%s638 + $0x30] sm:$0xf]
        %v1640 = vld [vmem:[%s638 + $0x34] sm:$0xf]
        %v1641 = vld [vmem:[%s638 + $0x38] sm:$0xf]
        %v1642 = vld [vmem:[%s638 + $0x3c] sm:$0xf]
        %v1643 = vld [vmem:[%s766] sm:$0x1]
        %v1645 = vlaneseq
        %v1646 = vshrl.u32 %v1645, 7
        %v1647 = vsub.s32 0, %v1646
        %v1648 = vrot.slane %v1643, %v1647
        %v1666 = vunpack.c.l.b16 %v1627
        %v1667 = vunpack.c.l.b16 %v1628
        %v1668 = vunpack.c.l.b16 %v1629
        %v1669 = vunpack.c.l.b16 %v1630
        %v1670 = vunpack.c.l.b16 %v1631
        %v1671 = vunpack.c.l.b16 %v1632
        %v1672 = vunpack.c.l.b16 %v1633
        %v1673 = vunpack.c.l.b16 %v1634
        %v1674 = vunpack.c.l.b16 %v1635
        %v1675 = vunpack.c.l.b16 %v1636
        %v1676 = vunpack.c.l.b16 %v1637
        %v1677 = vunpack.c.l.b16 %v1638
        %v1678 = vunpack.c.l.b16 %v1639
        %v1679 = vunpack.c.l.b16 %v1640
        %v1680 = vunpack.c.l.b16 %v1641
        %v1681 = vunpack.c.l.b16 %v1642
        %v1682 = vpack.c.b16 %v1667, %v1666
        %v1683 = vpack.c.b16 %v1669, %v1668
        %v1684 = vpack.c.b16 %v1671, %v1670
        %v1685 = vpack.c.b16 %v1673, %v1672
        %v1686 = vpack.c.b16 %v1675, %v1674
        %v1687 = vpack.c.b16 %v1677, %v1676
        %v1688 = vpack.c.b16 %v1679, %v1678
        %v1689 = vpack.c.b16 %v1681, %v1680
        %1698 = vmatprep.subr.bf16.mxu0 0
        %1699 = vmatpush1.bf16.msra.mxu0 %v1682
        %1700 = vmatprep.subr.bf16.mxu0 0
        %1701 = vmatpush1.bf16.msra.mxu0 %v1683
        %1702 = vmatprep.subr.bf16.mxu0 0
        %1703 = vmatpush1.bf16.msra.mxu0 %v1684
        %1704 = vmatprep.subr.bf16.mxu0 0
        %1705 = vmatpush1.bf16.msra.mxu0 %v1685
        %1706 = vmatprep.subr.bf16.mxu0 0
        %1707 = vmatpush1.bf16.msra.mxu0 %v1686
        %1708 = vmatprep.subr.bf16.mxu0 0
        %1709 = vmatpush1.bf16.msra.mxu0 %v1687
        %1710 = vmatprep.subr.bf16.mxu0 0
        %1711 = vmatpush1.bf16.msra.mxu0 %v1688
        %1712 = vmatprep.subr.bf16.mxu0 0
        %1713 = vmatpush1.bf16.msra.mxu0 %v1689
        %1714 = vmatprep.subr.bf16.mxu0 0
        %1715 = vmatpush1.bf16.msra.mxu0 0
        %1716 = vmatprep.subr.bf16.mxu0 0
        %1717 = vmatpush1.bf16.msra.mxu0 0
        %1718 = vmatprep.subr.bf16.mxu0 0
        %1719 = vmatpush1.bf16.msra.mxu0 0
        %1720 = vmatprep.subr.bf16.mxu0 0
        %1721 = vmatpush1.bf16.msra.mxu0 0
        %1722 = vmatprep.subr.bf16.mxu0 0
        %1723 = vmatpush1.bf16.msra.mxu0 0
        %1724 = vmatprep.subr.bf16.mxu0 0
        %1725 = vmatpush1.bf16.msra.mxu0 0
        %1726 = vmatprep.subr.bf16.mxu0 0
        %1727 = vmatpush1.bf16.msra.mxu0 0
        %1728 = vmatprep.subr.bf16.mxu0 0
        %1729 = vmatpush1.bf16.msra.mxu0 0
        %1730 = vmatprep.mubr.bf16.mxu0 0
        %1731 = vmatmul.mubr.bf16.gmra.mrb[0].mxu0 %v1626
        %v1732 = vpop.f32.mrb[0].mxu0
        %v1733 = vadd.f32 %v1648, %v1732
        %v1734 = vpop.f32.mrb[0].mxu0
        %v1735 = vpop.f32.mrb[0].mxu0
        %v1736 = vadd.f32 %v1648, %v1735
        %v1737 = vpop.f32.mrb[0].mxu0
        %1738 = vdwg.mxu0
        %v1739 = vadd.f32 %v1733, %v789
        %v1740 = vadd.f32 %v1736, %v790
        %v1741 = vld [vmem:[%s769] sm:$0x1]
        %v1742 = vld [vmem:[%s772] sm:$0x1]
        %1743 = vadd.xlane.f32.xlu0 %v1739
        %v1744 = vpop.xlane.xlu0 %1743
        %1745 = vadd.xlane.f32.xlu0 %v1740
        %v1746 = vpop.xlane.xlu0 %1745
        %v1747 = vmul.f32 %v1744, %v797
        %v1748 = vmul.f32 %v1746, %v797
        %v1749 = vsub.f32 %v1739, %v1747
        %v1750 = vsub.f32 %v1740, %v1748
        %v1751 = vmul.f32 %v1749, %v1749
        %v1752 = vmul.f32 %v1750, %v1750
        %1753 = vadd.xlane.f32.xlu0 %v1751
        %v1754 = vpop.xlane.xlu0 %1753
        %1755 = vadd.xlane.f32.xlu0 %v1752
        %v1756 = vpop.xlane.xlu0 %1755
        %v1757 = vmul.f32 %v1754, %v797
        %v1758 = vmul.f32 %v1756, %v797
        %v1759 = vadd.f32 %v1757, 1e-05
        %v1760 = vadd.f32 %v1758, 1e-05
        %v1761 = vrsqrt.pop %v1759
        %v1762 = vrsqrt.pop %v1760
        %v1763 = vmul.f32 %v1749, %v1761
        %v1764 = vmul.f32 %v1750, %v1762
        %v1766 = vlaneseq
        %v1767 = vshrl.u32 %v1766, 7
        %v1768 = vsub.s32 0, %v1767
        %v1769 = vrot.slane %v1741, %v1768
        %v1771 = vmul.f32 %v1763, %v1769
        %v1772 = vmul.f32 %v1764, %v1769
        %v1774 = vlaneseq
        %v1775 = vshrl.u32 %v1774, 7
        %v1776 = vsub.s32 0, %v1775
        %v1777 = vrot.slane %v1742, %v1776
        %v1779 = vadd.f32 %v1771, %v1777
        %v1780 = vadd.f32 %v1772, %v1777
        %v1781 = vpack.c.bf16 %v1780, %v1779
        %v1782 = vld [vmem:[%s647] sm:$0xff]
        %v1783 = vld [vmem:[%s647 + $0x8] sm:$0xff]
        %v1784 = vld [vmem:[%s647 + $0x10] sm:$0xff]
        %v1785 = vld [vmem:[%s647 + $0x18] sm:$0xff]
        %v1786 = vld [vmem:[%s647 + $0x20] sm:$0xff]
        %v1787 = vld [vmem:[%s647 + $0x28] sm:$0xff]
        %v1788 = vld [vmem:[%s647 + $0x30] sm:$0xff]
        %v1789 = vld [vmem:[%s647 + $0x38] sm:$0xff]
        %v1790 = vld [vmem:[%s647 + $0x40] sm:$0xff]
        %v1791 = vld [vmem:[%s647 + $0x48] sm:$0xff]
        %v1792 = vld [vmem:[%s647 + $0x50] sm:$0xff]
        %v1793 = vld [vmem:[%s647 + $0x58] sm:$0xff]
        %v1794 = vld [vmem:[%s647 + $0x60] sm:$0xff]
        %v1795 = vld [vmem:[%s647 + $0x68] sm:$0xff]
        %v1796 = vld [vmem:[%s647 + $0x70] sm:$0xff]
        %v1797 = vld [vmem:[%s647 + $0x78] sm:$0xff]
        %v1798 = vld [vmem:[%s647 + $0x80] sm:$0xff]
        %v1799 = vld [vmem:[%s647 + $0x88] sm:$0xff]
        %v1800 = vld [vmem:[%s647 + $0x90] sm:$0xff]
        %v1801 = vld [vmem:[%s647 + $0x98] sm:$0xff]
        %v1802 = vld [vmem:[%s647 + $0xa0] sm:$0xff]
        %v1803 = vld [vmem:[%s647 + $0xa8] sm:$0xff]
        %v1804 = vld [vmem:[%s647 + $0xb0] sm:$0xff]
        %v1805 = vld [vmem:[%s647 + $0xb8] sm:$0xff]
        %v1806 = vld [vmem:[%s647 + $0xc0] sm:$0xff]
        %v1807 = vld [vmem:[%s647 + $0xc8] sm:$0xff]
        %v1808 = vld [vmem:[%s647 + $0xd0] sm:$0xff]
        %v1809 = vld [vmem:[%s647 + $0xd8] sm:$0xff]
        %v1810 = vld [vmem:[%s647 + $0xe0] sm:$0xff]
        %v1811 = vld [vmem:[%s647 + $0xe8] sm:$0xff]
        %v1812 = vld [vmem:[%s647 + $0xf0] sm:$0xff]
        %v1813 = vld [vmem:[%s647 + $0xf8] sm:$0xff]
        %v1814 = vld [vmem:[%s776] sm:$0xf]
        %v1816 = vlaneseq
        %v1817 = vshrl.u32 %v1816, 7
        %v1818 = vsub.s32 0, %v1817
        %v1819 = vrot.slane %v1814, %v1818
        %v1820 = vlaneseq
        %v1821 = vshrl.u32 %v1820, 7
        %v1822 = vsub.s32 1, %v1821
        %v1823 = vrot.slane %v1814, %v1822
        %v1824 = vlaneseq
        %v1825 = vshrl.u32 %v1824, 7
        %v1826 = vsub.s32 2, %v1825
        %v1827 = vrot.slane %v1814, %v1826
        %v1828 = vlaneseq
        %v1829 = vshrl.u32 %v1828, 7
        %v1830 = vsub.s32 3, %v1829
        %v1831 = vrot.slane %v1814, %v1830
        %v1868 = vunpack.c.l.b16 %v1782
        %v1869 = vunpack.c.h.b16 %v1782
        %v1870 = vunpack.c.l.b16 %v1783
        %v1871 = vunpack.c.h.b16 %v1783
        %v1872 = vunpack.c.l.b16 %v1784
        %v1873 = vunpack.c.h.b16 %v1784
        %v1874 = vunpack.c.l.b16 %v1785
        %v1875 = vunpack.c.h.b16 %v1785
        %v1876 = vunpack.c.l.b16 %v1786
        %v1877 = vunpack.c.h.b16 %v1786
        %v1878 = vunpack.c.l.b16 %v1787
        %v1879 = vunpack.c.h.b16 %v1787
        %v1880 = vunpack.c.l.b16 %v1788
        %v1881 = vunpack.c.h.b16 %v1788
        %v1882 = vunpack.c.l.b16 %v1789
        %v1883 = vunpack.c.h.b16 %v1789
        %v1884 = vunpack.c.l.b16 %v1790
        %v1885 = vunpack.c.h.b16 %v1790
        %v1886 = vunpack.c.l.b16 %v1791
        %v1887 = vunpack.c.h.b16 %v1791
        %v1888 = vunpack.c.l.b16 %v1792
        %v1889 = vunpack.c.h.b16 %v1792
        %v1890 = vunpack.c.l.b16 %v1793
        %v1891 = vunpack.c.h.b16 %v1793
        %v1892 = vunpack.c.l.b16 %v1794
        %v1893 = vunpack.c.h.b16 %v1794
        %v1894 = vunpack.c.l.b16 %v1795
        %v1895 = vunpack.c.h.b16 %v1795
        %v1896 = vunpack.c.l.b16 %v1796
        %v1897 = vunpack.c.h.b16 %v1796
        %v1898 = vunpack.c.l.b16 %v1797
        %v1899 = vunpack.c.h.b16 %v1797
        %v1900 = vunpack.c.l.b16 %v1798
        %v1901 = vunpack.c.h.b16 %v1798
        %v1902 = vunpack.c.l.b16 %v1799
        %v1903 = vunpack.c.h.b16 %v1799
        %v1904 = vunpack.c.l.b16 %v1800
        %v1905 = vunpack.c.h.b16 %v1800
        %v1906 = vunpack.c.l.b16 %v1801
        %v1907 = vunpack.c.h.b16 %v1801
        %v1908 = vunpack.c.l.b16 %v1802
        %v1909 = vunpack.c.h.b16 %v1802
        %v1910 = vunpack.c.l.b16 %v1803
        %v1911 = vunpack.c.h.b16 %v1803
        %v1912 = vunpack.c.l.b16 %v1804
        %v1913 = vunpack.c.h.b16 %v1804
        %v1914 = vunpack.c.l.b16 %v1805
        %v1915 = vunpack.c.h.b16 %v1805
        %v1916 = vunpack.c.l.b16 %v1806
        %v1917 = vunpack.c.h.b16 %v1806
        %v1918 = vunpack.c.l.b16 %v1807
        %v1919 = vunpack.c.h.b16 %v1807
        %v1920 = vunpack.c.l.b16 %v1808
        %v1921 = vunpack.c.h.b16 %v1808
        %v1922 = vunpack.c.l.b16 %v1809
        %v1923 = vunpack.c.h.b16 %v1809
        %v1924 = vunpack.c.l.b16 %v1810
        %v1925 = vunpack.c.h.b16 %v1810
        %v1926 = vunpack.c.l.b16 %v1811
        %v1927 = vunpack.c.h.b16 %v1811
        %v1928 = vunpack.c.l.b16 %v1812
        %v1929 = vunpack.c.h.b16 %v1812
        %v1930 = vunpack.c.l.b16 %v1813
        %v1931 = vunpack.c.h.b16 %v1813
        %v1932 = vpack.c.b16 %v1872, %v1868
        %v1933 = vpack.c.b16 %v1873, %v1869
        %v1934 = vpack.c.b16 %v1874, %v1870
        %v1935 = vpack.c.b16 %v1875, %v1871
        %v1936 = vpack.c.b16 %v1880, %v1876
        %v1937 = vpack.c.b16 %v1881, %v1877
        %v1938 = vpack.c.b16 %v1882, %v1878
        %v1939 = vpack.c.b16 %v1883, %v1879
        %v1940 = vpack.c.b16 %v1888, %v1884
        %v1941 = vpack.c.b16 %v1889, %v1885
        %v1942 = vpack.c.b16 %v1890, %v1886
        %v1943 = vpack.c.b16 %v1891, %v1887
        %v1944 = vpack.c.b16 %v1896, %v1892
        %v1945 = vpack.c.b16 %v1897, %v1893
        %v1946 = vpack.c.b16 %v1898, %v1894
        %v1947 = vpack.c.b16 %v1899, %v1895
        %v1948 = vpack.c.b16 %v1904, %v1900
        %v1949 = vpack.c.b16 %v1905, %v1901
        %v1950 = vpack.c.b16 %v1906, %v1902
        %v1951 = vpack.c.b16 %v1907, %v1903
        %v1952 = vpack.c.b16 %v1912, %v1908
        %v1953 = vpack.c.b16 %v1913, %v1909
        %v1954 = vpack.c.b16 %v1914, %v1910
        %v1955 = vpack.c.b16 %v1915, %v1911
        %v1956 = vpack.c.b16 %v1920, %v1916
        %v1957 = vpack.c.b16 %v1921, %v1917
        %v1958 = vpack.c.b16 %v1922, %v1918
        %v1959 = vpack.c.b16 %v1923, %v1919
        %v1960 = vpack.c.b16 %v1928, %v1924
        %v1961 = vpack.c.b16 %v1929, %v1925
        %v1962 = vpack.c.b16 %v1930, %v1926
        %v1963 = vpack.c.b16 %v1931, %v1927
        %1996 = vmatprep.subr.bf16.mxu0 %v1933
        %1997 = vmatpush1.bf16.msra.mxu0 %v1932
        %1998 = vmatprep.subr.bf16.mxu0 %v1937
        %1999 = vmatpush1.bf16.msra.mxu0 %v1936
        %2000 = vmatprep.subr.bf16.mxu0 %v1941
        %2001 = vmatpush1.bf16.msra.mxu0 %v1940
        %2002 = vmatprep.subr.bf16.mxu0 %v1945
        %2003 = vmatpush1.bf16.msra.mxu0 %v1944
        %2004 = vmatprep.subr.bf16.mxu0 %v1949
        %2005 = vmatpush1.bf16.msra.mxu0 %v1948
        %2006 = vmatprep.subr.bf16.mxu0 %v1953
        %2007 = vmatpush1.bf16.msra.mxu0 %v1952
        %2008 = vmatprep.subr.bf16.mxu0 %v1957
        %2009 = vmatpush1.bf16.msra.mxu0 %v1956
        %2010 = vmatprep.subr.bf16.mxu0 %v1961
        %2011 = vmatpush1.bf16.msra.mxu0 %v1960
        %2012 = vmatprep.subr.bf16.mxu0 0
        %2013 = vmatpush1.bf16.msra.mxu0 0
        %2014 = vmatprep.subr.bf16.mxu0 0
        %2015 = vmatpush1.bf16.msra.mxu0 0
        %2016 = vmatprep.subr.bf16.mxu0 0
        %2017 = vmatpush1.bf16.msra.mxu0 0
        %2018 = vmatprep.subr.bf16.mxu0 0
        %2019 = vmatpush1.bf16.msra.mxu0 0
        %2020 = vmatprep.subr.bf16.mxu0 0
        %2021 = vmatpush1.bf16.msra.mxu0 0
        %2022 = vmatprep.subr.bf16.mxu0 0
        %2023 = vmatpush1.bf16.msra.mxu0 0
        %2024 = vmatprep.subr.bf16.mxu0 0
        %2025 = vmatpush1.bf16.msra.mxu0 0
        %2026 = vmatprep.subr.bf16.mxu0 0
        %2027 = vmatpush1.bf16.msra.mxu0 0
        %2028 = vmatprep.mubr.bf16.mxu0 0
        %2029 = vmatmul.mubr.bf16.gmra.mrb[0].mxu0 %v1781
        %v2030 = vpop.f32.mrb[0].mxu0
        %v2031 = vadd.f32 %v1819, %v2030
        %v2032 = vpop.f32.mrb[0].mxu0
        %v2033 = vadd.f32 %v1823, %v2032
        %v2034 = vpop.f32.mrb[0].mxu0
        %v2035 = vadd.f32 %v1819, %v2034
        %v2036 = vpop.f32.mrb[0].mxu0
        %v2037 = vadd.f32 %v1823, %v2036
        %2038 = vdwg.mxu0
        %2039 = vmatprep.subr.bf16.mxu0 %v1935
        %2040 = vmatpush1.bf16.msra.mxu0 %v1934
        %2041 = vmatprep.subr.bf16.mxu0 %v1939
        %2042 = vmatpush1.bf16.msra.mxu0 %v1938
        %2043 = vmatprep.subr.bf16.mxu0 %v1943
        %2044 = vmatpush1.bf16.msra.mxu0 %v1942
        %2045 = vmatprep.subr.bf16.mxu0 %v1947
        %2046 = vmatpush1.bf16.msra.mxu0 %v1946
        %2047 = vmatprep.subr.bf16.mxu0 %v1951
        %2048 = vmatpush1.bf16.msra.mxu0 %v1950
        %2049 = vmatprep.subr.bf16.mxu0 %v1955
        %2050 = vmatpush1.bf16.msra.mxu0 %v1954
        %2051 = vmatprep.subr.bf16.mxu0 %v1959
        %2052 = vmatpush1.bf16.msra.mxu0 %v1958
        %2053 = vmatprep.subr.bf16.mxu0 %v1963
        %2054 = vmatpush1.bf16.msra.mxu0 %v1962
        %2055 = vmatprep.subr.bf16.mxu0 0
        %2056 = vmatpush1.bf16.msra.mxu0 0
        %2057 = vmatprep.subr.bf16.mxu0 0
        %2058 = vmatpush1.bf16.msra.mxu0 0
        %2059 = vmatprep.subr.bf16.mxu0 0
        %2060 = vmatpush1.bf16.msra.mxu0 0
        %2061 = vmatprep.subr.bf16.mxu0 0
        %2062 = vmatpush1.bf16.msra.mxu0 0
        %2063 = vmatprep.subr.bf16.mxu0 0
        %2064 = vmatpush1.bf16.msra.mxu0 0
        %2065 = vmatprep.subr.bf16.mxu0 0
        %2066 = vmatpush1.bf16.msra.mxu0 0
        %2067 = vmatprep.subr.bf16.mxu0 0
        %2068 = vmatpush1.bf16.msra.mxu0 0
        %2069 = vmatprep.subr.bf16.mxu0 0
        %2070 = vmatpush1.bf16.msra.mxu0 0
        %2071 = vmatprep.mubr.bf16.mxu0 0
        %2072 = vmatmul.mubr.bf16.gmra.mrb[0].mxu0 %v1781
        %v2073 = vpop.f32.mrb[0].mxu0
        %v2074 = vadd.f32 %v1827, %v2073
        %v2075 = vpop.f32.mrb[0].mxu0
        %v2076 = vadd.f32 %v1831, %v2075
        %v2077 = vpop.f32.mrb[0].mxu0
        %v2078 = vadd.f32 %v1827, %v2077
        %v2079 = vpop.f32.mrb[0].mxu0
        %v2080 = vadd.f32 %v1831, %v2079
        %2081 = vdwg.mxu0
        %v2082 = vmul.f32 %v2031, 1.702
        %v2083 = vmul.f32 %v2033, 1.702
        %v2084 = vmul.f32 %v2074, 1.702
        %v2085 = vmul.f32 %v2076, 1.702
        %v2086 = vmul.f32 %v2035, 1.702
        %v2087 = vmul.f32 %v2037, 1.702
        %v2088 = vmul.f32 %v2078, 1.702
        %v2089 = vmul.f32 %v2080, 1.702
        %v2090 = vxor.u32 %v2082, 2147483648
        %v2091 = vxor.u32 %v2083, 2147483648
        %v2092 = vxor.u32 %v2084, 2147483648
        %v2093 = vxor.u32 %v2085, 2147483648
        %v2094 = vxor.u32 %v2086, 2147483648
        %v2095 = vxor.u32 %v2087, 2147483648
        %v2096 = vxor.u32 %v2088, 2147483648
        %v2097 = vxor.u32 %v2089, 2147483648
        %v2098 = vmul.f32 %v2090, 1.442695
        %v2099 = vpow.pop %v2098
        %v2100 = vmul.f32 %v2091, 1.442695
        %v2101 = vpow.pop %v2100
        %v2102 = vmul.f32 %v2092, 1.442695
        %v2103 = vpow.pop %v2102
        %v2104 = vmul.f32 %v2093, 1.442695
        %v2105 = vpow.pop %v2104
        %v2106 = vmul.f32 %v2094, 1.442695
        %v2107 = vpow.pop %v2106
        %v2108 = vmul.f32 %v2095, 1.442695
        %v2109 = vpow.pop %v2108
        %v2110 = vmul.f32 %v2096, 1.442695
        %v2111 = vpow.pop %v2110
        %v2112 = vmul.f32 %v2097, 1.442695
        %v2113 = vpow.pop %v2112
        %v2114 = vadd.f32 %v2099, 1.0
        %v2115 = vadd.f32 %v2101, 1.0
        %v2116 = vadd.f32 %v2103, 1.0
        %v2117 = vadd.f32 %v2105, 1.0
        %v2118 = vadd.f32 %v2107, 1.0
        %v2119 = vadd.f32 %v2109, 1.0
        %v2120 = vadd.f32 %v2111, 1.0
        %v2121 = vadd.f32 %v2113, 1.0
        %v2122 = vrcp.pop %v2114
        %v2123 = vmul.f32 1.0, %v2122
        %v2124 = vrcp.pop %v2115
        %v2125 = vmul.f32 1.0, %v2124
        %v2126 = vrcp.pop %v2116
        %v2127 = vmul.f32 1.0, %v2126
        %v2128 = vrcp.pop %v2117
        %v2129 = vmul.f32 1.0, %v2128
        %v2130 = vrcp.pop %v2118
        %v2131 = vmul.f32 1.0, %v2130
        %v2132 = vrcp.pop %v2119
        %v2133 = vmul.f32 1.0, %v2132
        %v2134 = vrcp.pop %v2120
        %v2135 = vmul.f32 1.0, %v2134
        %v2136 = vrcp.pop %v2121
        %v2137 = vmul.f32 1.0, %v2136
        %v2138 = vmul.f32 %v2031, %v2123
        %v2139 = vmul.f32 %v2033, %v2125
        %v2140 = vmul.f32 %v2074, %v2127
        %v2141 = vmul.f32 %v2076, %v2129
        %v2142 = vmul.f32 %v2035, %v2131
        %v2143 = vmul.f32 %v2037, %v2133
        %v2144 = vmul.f32 %v2078, %v2135
        %v2145 = vmul.f32 %v2080, %v2137
        %v2146 = vpack.c.bf16 %v2142, %v2138
        %v2147 = vpack.c.bf16 %v2143, %v2139
        %v2148 = vpack.c.bf16 %v2144, %v2140
        %v2149 = vpack.c.bf16 %v2145, %v2141
        %v2150 = vld [vmem:[%s656] sm:$0xf]
        %v2151 = vld [vmem:[%s656 + $0x4] sm:$0xf]
        %v2152 = vld [vmem:[%s656 + $0x8] sm:$0xf]
        %v2153 = vld [vmem:[%s656 + $0xc] sm:$0xf]
        %v2154 = vld [vmem:[%s656 + $0x10] sm:$0xf]
        %v2155 = vld [vmem:[%s656 + $0x14] sm:$0xf]
        %v2156 = vld [vmem:[%s656 + $0x18] sm:$0xf]
        %v2157 = vld [vmem:[%s656 + $0x1c] sm:$0xf]
        %v2158 = vld [vmem:[%s656 + $0x20] sm:$0xf]
        %v2159 = vld [vmem:[%s656 + $0x24] sm:$0xf]
        %v2160 = vld [vmem:[%s656 + $0x28] sm:$0xf]
        %v2161 = vld [vmem:[%s656 + $0x2c] sm:$0xf]
        %v2162 = vld [vmem:[%s656 + $0x30] sm:$0xf]
        %v2163 = vld [vmem:[%s656 + $0x34] sm:$0xf]
        %v2164 = vld [vmem:[%s656 + $0x38] sm:$0xf]
        %v2165 = vld [vmem:[%s656 + $0x3c] sm:$0xf]
        %v2166 = vld [vmem:[%s656 + $0x40] sm:$0xf]
        %v2167 = vld [vmem:[%s656 + $0x44] sm:$0xf]
        %v2168 = vld [vmem:[%s656 + $0x48] sm:$0xf]
        %v2169 = vld [vmem:[%s656 + $0x4c] sm:$0xf]
        %v2170 = vld [vmem:[%s656 + $0x50] sm:$0xf]
        %v2171 = vld [vmem:[%s656 + $0x54] sm:$0xf]
        %v2172 = vld [vmem:[%s656 + $0x58] sm:$0xf]
        %v2173 = vld [vmem:[%s656 + $0x5c] sm:$0xf]
        %v2174 = vld [vmem:[%s656 + $0x60] sm:$0xf]
        %v2175 = vld [vmem:[%s656 + $0x64] sm:$0xf]
        %v2176 = vld [vmem:[%s656 + $0x68] sm:$0xf]
        %v2177 = vld [vmem:[%s656 + $0x6c] sm:$0xf]
        %v2178 = vld [vmem:[%s656 + $0x70] sm:$0xf]
        %v2179 = vld [vmem:[%s656 + $0x74] sm:$0xf]
        %v2180 = vld [vmem:[%s656 + $0x78] sm:$0xf]
        %v2181 = vld [vmem:[%s656 + $0x7c] sm:$0xf]
        %v2182 = vld [vmem:[%s656 + $0x80] sm:$0xf]
        %v2183 = vld [vmem:[%s656 + $0x84] sm:$0xf]
        %v2184 = vld [vmem:[%s656 + $0x88] sm:$0xf]
        %v2185 = vld [vmem:[%s656 + $0x8c] sm:$0xf]
        %v2186 = vld [vmem:[%s656 + $0x90] sm:$0xf]
        %v2187 = vld [vmem:[%s656 + $0x94] sm:$0xf]
        %v2188 = vld [vmem:[%s656 + $0x98] sm:$0xf]
        %v2189 = vld [vmem:[%s656 + $0x9c] sm:$0xf]
        %v2190 = vld [vmem:[%s656 + $0xa0] sm:$0xf]
        %v2191 = vld [vmem:[%s656 + $0xa4] sm:$0xf]
        %v2192 = vld [vmem:[%s656 + $0xa8] sm:$0xf]
        %v2193 = vld [vmem:[%s656 + $0xac] sm:$0xf]
        %v2194 = vld [vmem:[%s656 + $0xb0] sm:$0xf]
        %v2195 = vld [vmem:[%s656 + $0xb4] sm:$0xf]
        %v2196 = vld [vmem:[%s656 + $0xb8] sm:$0xf]
        %v2197 = vld [vmem:[%s656 + $0xbc] sm:$0xf]
        %v2198 = vld [vmem:[%s656 + $0xc0] sm:$0xf]
        %v2199 = vld [vmem:[%s656 + $0xc4] sm:$0xf]
        %v2200 = vld [vmem:[%s656 + $0xc8] sm:$0xf]
        %v2201 = vld [vmem:[%s656 + $0xcc] sm:$0xf]
        %v2202 = vld [vmem:[%s656 + $0xd0] sm:$0xf]
        %v2203 = vld [vmem:[%s656 + $0xd4] sm:$0xf]
        %v2204 = vld [vmem:[%s656 + $0xd8] sm:$0xf]
        %v2205 = vld [vmem:[%s656 + $0xdc] sm:$0xf]
        %v2206 = vld [vmem:[%s656 + $0xe0] sm:$0xf]
        %v2207 = vld [vmem:[%s656 + $0xe4] sm:$0xf]
        %v2208 = vld [vmem:[%s656 + $0xe8] sm:$0xf]
        %v2209 = vld [vmem:[%s656 + $0xec] sm:$0xf]
        %v2210 = vld [vmem:[%s656 + $0xf0] sm:$0xf]
        %v2211 = vld [vmem:[%s656 + $0xf4] sm:$0xf]
        %v2212 = vld [vmem:[%s656 + $0xf8] sm:$0xf]
        %v2213 = vld [vmem:[%s656 + $0xfc] sm:$0xf]
        %v2214 = vld [vmem:[%s779] sm:$0x1]
        %v2216 = vlaneseq
        %v2217 = vshrl.u32 %v2216, 7
        %v2218 = vsub.s32 0, %v2217
        %v2219 = vrot.slane %v2214, %v2218
        %v2285 = vunpack.c.l.b16 %v2150
        %v2286 = vunpack.c.l.b16 %v2151
        %v2287 = vunpack.c.l.b16 %v2152
        %v2288 = vunpack.c.l.b16 %v2153
        %v2289 = vunpack.c.l.b16 %v2154
        %v2290 = vunpack.c.l.b16 %v2155
        %v2291 = vunpack.c.l.b16 %v2156
        %v2292 = vunpack.c.l.b16 %v2157
        %v2293 = vunpack.c.l.b16 %v2158
        %v2294 = vunpack.c.l.b16 %v2159
        %v2295 = vunpack.c.l.b16 %v2160
        %v2296 = vunpack.c.l.b16 %v2161
        %v2297 = vunpack.c.l.b16 %v2162
        %v2298 = vunpack.c.l.b16 %v2163
        %v2299 = vunpack.c.l.b16 %v2164
        %v2300 = vunpack.c.l.b16 %v2165
        %v2301 = vunpack.c.l.b16 %v2166
        %v2302 = vunpack.c.l.b16 %v2167
        %v2303 = vunpack.c.l.b16 %v2168
        %v2304 = vunpack.c.l.b16 %v2169
        %v2305 = vunpack.c.l.b16 %v2170
        %v2306 = vunpack.c.l.b16 %v2171
        %v2307 = vunpack.c.l.b16 %v2172
        %v2308 = vunpack.c.l.b16 %v2173
        %v2309 = vunpack.c.l.b16 %v2174
        %v2310 = vunpack.c.l.b16 %v2175
        %v2311 = vunpack.c.l.b16 %v2176
        %v2312 = vunpack.c.l.b16 %v2177
        %v2313 = vunpack.c.l.b16 %v2178
        %v2314 = vunpack.c.l.b16 %v2179
        %v2315 = vunpack.c.l.b16 %v2180
        %v2316 = vunpack.c.l.b16 %v2181
        %v2317 = vunpack.c.l.b16 %v2182
        %v2318 = vunpack.c.l.b16 %v2183
        %v2319 = vunpack.c.l.b16 %v2184
        %v2320 = vunpack.c.l.b16 %v2185
        %v2321 = vunpack.c.l.b16 %v2186
        %v2322 = vunpack.c.l.b16 %v2187
        %v2323 = vunpack.c.l.b16 %v2188
        %v2324 = vunpack.c.l.b16 %v2189
        %v2325 = vunpack.c.l.b16 %v2190
        %v2326 = vunpack.c.l.b16 %v2191
        %v2327 = vunpack.c.l.b16 %v2192
        %v2328 = vunpack.c.l.b16 %v2193
        %v2329 = vunpack.c.l.b16 %v2194
        %v2330 = vunpack.c.l.b16 %v2195
        %v2331 = vunpack.c.l.b16 %v2196
        %v2332 = vunpack.c.l.b16 %v2197
        %v2333 = vunpack.c.l.b16 %v2198
        %v2334 = vunpack.c.l.b16 %v2199
        %v2335 = vunpack.c.l.b16 %v2200
        %v2336 = vunpack.c.l.b16 %v2201
        %v2337 = vunpack.c.l.b16 %v2202
        %v2338 = vunpack.c.l.b16 %v2203
        %v2339 = vunpack.c.l.b16 %v2204
        %v2340 = vunpack.c.l.b16 %v2205
        %v2341 = vunpack.c.l.b16 %v2206
        %v2342 = vunpack.c.l.b16 %v2207
        %v2343 = vunpack.c.l.b16 %v2208
        %v2344 = vunpack.c.l.b16 %v2209
        %v2345 = vunpack.c.l.b16 %v2210
        %v2346 = vunpack.c.l.b16 %v2211
        %v2347 = vunpack.c.l.b16 %v2212
        %v2348 = vunpack.c.l.b16 %v2213
        %v2349 = vpack.c.b16 %v2286, %v2285
        %v2350 = vpack.c.b16 %v2288, %v2287
        %v2351 = vpack.c.b16 %v2290, %v2289
        %v2352 = vpack.c.b16 %v2292, %v2291
        %v2353 = vpack.c.b16 %v2294, %v2293
        %v2354 = vpack.c.b16 %v2296, %v2295
        %v2355 = vpack.c.b16 %v2298, %v2297
        %v2356 = vpack.c.b16 %v2300, %v2299
        %v2357 = vpack.c.b16 %v2302, %v2301
        %v2358 = vpack.c.b16 %v2304, %v2303
        %v2359 = vpack.c.b16 %v2306, %v2305
        %v2360 = vpack.c.b16 %v2308, %v2307
        %v2361 = vpack.c.b16 %v2310, %v2309
        %v2362 = vpack.c.b16 %v2312, %v2311
        %v2363 = vpack.c.b16 %v2314, %v2313
        %v2364 = vpack.c.b16 %v2316, %v2315
        %v2365 = vpack.c.b16 %v2318, %v2317
        %v2366 = vpack.c.b16 %v2320, %v2319
        %v2367 = vpack.c.b16 %v2322, %v2321
        %v2368 = vpack.c.b16 %v2324, %v2323
        %v2369 = vpack.c.b16 %v2326, %v2325
        %v2370 = vpack.c.b16 %v2328, %v2327
        %v2371 = vpack.c.b16 %v2330, %v2329
        %v2372 = vpack.c.b16 %v2332, %v2331
        %v2373 = vpack.c.b16 %v2334, %v2333
        %v2374 = vpack.c.b16 %v2336, %v2335
        %v2375 = vpack.c.b16 %v2338, %v2337
        %v2376 = vpack.c.b16 %v2340, %v2339
        %v2377 = vpack.c.b16 %v2342, %v2341
        %v2378 = vpack.c.b16 %v2344, %v2343
        %v2379 = vpack.c.b16 %v2346, %v2345
        %v2380 = vpack.c.b16 %v2348, %v2347
        %2413 = vmatprep.subr.bf16.mxu0 0
        %2414 = vmatpush1.bf16.msra.mxu0 %v2349
        %2415 = vmatprep.subr.bf16.mxu0 0
        %2416 = vmatpush1.bf16.msra.mxu0 %v2350
        %2417 = vmatprep.subr.bf16.mxu0 0
        %2418 = vmatpush1.bf16.msra.mxu0 %v2351
        %2419 = vmatprep.subr.bf16.mxu0 0
        %2420 = vmatpush1.bf16.msra.mxu0 %v2352
        %2421 = vmatprep.subr.bf16.mxu0 0
        %2422 = vmatpush1.bf16.msra.mxu0 %v2353
        %2423 = vmatprep.subr.bf16.mxu0 0
        %2424 = vmatpush1.bf16.msra.mxu0 %v2354
        %2425 = vmatprep.subr.bf16.mxu0 0
        %2426 = vmatpush1.bf16.msra.mxu0 %v2355
        %2427 = vmatprep.subr.bf16.mxu0 0
        %2428 = vmatpush1.bf16.msra.mxu0 %v2356
        %2429 = vmatprep.subr.bf16.mxu0 0
        %2430 = vmatpush1.bf16.msra.mxu0 %v2357
        %2431 = vmatprep.subr.bf16.mxu0 0
        %2432 = vmatpush1.bf16.msra.mxu0 %v2358
        %2433 = vmatprep.subr.bf16.mxu0 0
        %2434 = vmatpush1.bf16.msra.mxu0 %v2359
        %2435 = vmatprep.subr.bf16.mxu0 0
        %2436 = vmatpush1.bf16.msra.mxu0 %v2360
        %2437 = vmatprep.subr.bf16.mxu0 0
        %2438 = vmatpush1.bf16.msra.mxu0 %v2361
        %2439 = vmatprep.subr.bf16.mxu0 0
        %2440 = vmatpush1.bf16.msra.mxu0 %v2362
        %2441 = vmatprep.subr.bf16.mxu0 0
        %2442 = vmatpush1.bf16.msra.mxu0 %v2363
        %2443 = vmatprep.subr.bf16.mxu0 0
        %2444 = vmatpush1.bf16.msra.mxu0 %v2364
        %2445 = vmatprep.mubr.bf16.mxu0 %v2147
        %2446 = vmatmul.mubr.bf16.gmra.mrb[0].mxu0 %v2146
        %v2447 = vpop.f32.mrb[0].mxu0
        %v2448 = vadd.f32 %v2219, %v2447
        %v2449 = vpop.f32.mrb[0].mxu0
        %v2450 = vpop.f32.mrb[0].mxu0
        %v2451 = vadd.f32 %v2219, %v2450
        %v2452 = vpop.f32.mrb[0].mxu0
        %2453 = vdwg.mxu0
        %2454 = vmatprep.subr.bf16.mxu0 0
        %2455 = vmatpush1.bf16.msra.mxu0 %v2365
        %2456 = vmatprep.subr.bf16.mxu0 0
        %2457 = vmatpush1.bf16.msra.mxu0 %v2366
        %2458 = vmatprep.subr.bf16.mxu0 0
        %2459 = vmatpush1.bf16.msra.mxu0 %v2367
        %2460 = vmatprep.subr.bf16.mxu0 0
        %2461 = vmatpush1.bf16.msra.mxu0 %v2368
        %2462 = vmatprep.subr.bf16.mxu0 0
        %2463 = vmatpush1.bf16.msra.mxu0 %v2369
        %2464 = vmatprep.subr.bf16.mxu0 0
        %2465 = vmatpush1.bf16.msra.mxu0 %v2370
        %2466 = vmatprep.subr.bf16.mxu0 0
        %2467 = vmatpush1.bf16.msra.mxu0 %v2371
        %2468 = vmatprep.subr.bf16.mxu0 0
        %2469 = vmatpush1.bf16.msra.mxu0 %v2372
        %2470 = vmatprep.subr.bf16.mxu0 0
        %2471 = vmatpush1.bf16.msra.mxu0 %v2373
        %2472 = vmatprep.subr.bf16.mxu0 0
        %2473 = vmatpush1.bf16.msra.mxu0 %v2374
        %2474 = vmatprep.subr.bf16.mxu0 0
        %2475 = vmatpush1.bf16.msra.mxu0 %v2375
        %2476 = vmatprep.subr.bf16.mxu0 0
        %2477 = vmatpush1.bf16.msra.mxu0 %v2376
        %2478 = vmatprep.subr.bf16.mxu0 0
        %2479 = vmatpush1.bf16.msra.mxu0 %v2377
        %2480 = vmatprep.subr.bf16.mxu0 0
        %2481 = vmatpush1.bf16.msra.mxu0 %v2378
        %2482 = vmatprep.subr.bf16.mxu0 0
        %2483 = vmatpush1.bf16.msra.mxu0 %v2379
        %2484 = vmatprep.subr.bf16.mxu0 0
        %2485 = vmatpush1.bf16.msra.mxu0 %v2380
        %2486 = vmatprep.mubr.bf16.mxu0 %v2149
        %2487 = vmatmul.mubr.bf16.gmra.mrb[0].mxu0 %v2148
        %v2488 = vpop.f32.mrb[0].mxu0
        %v2489 = vadd.f32 %v2448, %v2488
        %v2490 = vpop.f32.mrb[0].mxu0
        %v2491 = vpop.f32.mrb[0].mxu0
        %v2492 = vadd.f32 %v2451, %v2491
        %v2493 = vpop.f32.mrb[0].mxu0
        %2494 = vdwg.mxu0
        %v2495 = vadd.f32 %v2489, %v1739
        %v2496 = vadd.f32 %v2492, %v1740
        %2497 = vst [vmem:[#allocation2] sm:$0xff] %v2495
        %2498 = vst [vmem:[#allocation2 + $0x8] sm:$0xff] %v2496
        %p2499 = scmp.eq.s32.totalorder %s43, 1
        // Predicated region
        $region101: #{clip_forward.1} parent=79 // pred_check
          %p2500 = pneg %p2499
        $region102: #{clip_forward.1} parent=79 // pred_check_branch
          %2502 = sbr.rel (%p2500) target = $region104
        $region103: #{clip_forward.1} parent=79 // pred_region
          %v2503 = vld [vmem:[%s13] sm:$0x1]
          %v2504 = vld [vmem:[%s14] sm:$0x1]
          %2505 = vadd.xlane.f32.xlu0 %v2495
          %v2506 = vpop.xlane.xlu0 %2505
          %2507 = vadd.xlane.f32.xlu0 %v2496
          %v2508 = vpop.xlane.xlu0 %2507
          %v2509 = vmul.f32 %v2506, %v797
          %v2510 = vmul.f32 %v2508, %v797
          %v2511 = vsub.f32 %v2495, %v2509
          %v2512 = vsub.f32 %v2496, %v2510
          %v2513 = vmul.f32 %v2511, %v2511
          %v2514 = vmul.f32 %v2512, %v2512
          %2515 = vadd.xlane.f32.xlu0 %v2513
          %v2516 = vpop.xlane.xlu0 %2515
          %2517 = vadd.xlane.f32.xlu0 %v2514
          %v2518 = vpop.xlane.xlu0 %2517
          %v2519 = vmul.f32 %v2516, %v797
          %v2520 = vmul.f32 %v2518, %v797
          %v2521 = vadd.f32 %v2519, 1e-05
          %v2522 = vadd.f32 %v2520, 1e-05
          %v2523 = vrsqrt.pop %v2521
          %v2524 = vrsqrt.pop %v2522
          %v2525 = vmul.f32 %v2511, %v2523
          %v2526 = vmul.f32 %v2512, %v2524
          %v2528 = vlaneseq
          %v2529 = vshrl.u32 %v2528, 7
          %v2530 = vsub.s32 0, %v2529
          %v2531 = vrot.slane %v2503, %v2530
          %v2533 = vmul.f32 %v2525, %v2531
          %v2534 = vmul.f32 %v2526, %v2531
          %v2536 = vlaneseq
          %v2537 = vshrl.u32 %v2536, 7
          %v2538 = vsub.s32 0, %v2537
          %v2539 = vrot.slane %v2504, %v2538
          %v2541 = vadd.f32 %v2533, %v2539
          %v2542 = vadd.f32 %v2534, %v2539
          %2543 = vst [vmem:[%s748] sm:$0xff] %v2541
          %2544 = vst [vmem:[%s748 + $0x8] sm:$0xff] %v2542
        $region104: #{clip_forward.1} parent=79 // pred_fallthru
          _
        %s2545 = sand.u32 %s438, 1
        %s2546 = scalar_lea.sflag [#allocation9], %s2545
        %s2547 = sand.u32 %s438, 1
        %s2548 = smul.addr %s2547, 16
        %s2549 = scalar_lea.vmem [#allocation15], %s2548
        // Predicated region
        $region105: #{clip_forward.1} parent=79 // pred_check
          %p2550 = pneg %p448
        $region106: #{clip_forward.1} parent=79 // pred_check_branch
          %2552 = sbr.rel (%p2550) target = $region108
        $region107: #{clip_forward.1} parent=79 // pred_region
          %s2554 = ssub.s32 256, 256
          %2555 = vsyncadd %s2546, %s2554
          %s2556 = smul.addr %s42, 2
          %s2557 = smul.addr %s2556, 128
          %s2558 = scalar_lea.hbm %s15, %s2557
          %s2559 = sshll.u32 %s2549, 4
          %s2560 = int_to_ptr.vmem [resolvable:$true] %s2559
          %2565 = dma.vmem_to_hbm [thread:$0]  %s2560, 256, %s2558, %s2546, 128, 128, 8
        $region108: #{clip_forward.1} parent=79 // pred_fallthru
          _
      $region80: #{clip_forward.1} parent=5 // pred_fallthru
        _
      %p2566 = scmp.le.s32.totalorder 2, %s33
      // Predicated region
      $region109: #{clip_forward.1} parent=5 // pred_check
        %p2567 = pneg %p2566
      $region110: #{clip_forward.1} parent=5 // pred_check_branch
        %2569 = sbr.rel (%p2567) target = $region112
      $region111: #{clip_forward.1} parent=5 // pred_region
        %s2570 = ssub.s32 %s33, 2
        // Predicated region
        $region113: #{clip_forward.1} parent=111 // pred_check
          %p2571 = pneg %p454
        $region114: #{clip_forward.1} parent=111 // pred_check_branch
          %2573 = sbr.rel (%p2571) target = $region116
        $region115: #{clip_forward.1} parent=111 // pred_region
          %s2574 = sand.u32 %s439, 1
          %s2575 = scalar_lea.sflag [#allocation9], %s2574
          %s2576 = sand.u32 %s439, 1
          %s2577 = smul.addr %s2576, 16
          %s2578 = scalar_lea.vmem [#allocation15], %s2577
          %2579 = dma.done %s2575, 256
        $region116: #{clip_forward.1} parent=111 // pred_fallthru
          _
      $region112: #{clip_forward.1} parent=5 // pred_fallthru
        _
    $region6: #{clip_forward.1} parent=1 // loop_footer
      %s37 = sadd.s32 1, %s33
    $region7: #{clip_forward.1} parent=1 // loop_footer_branch
      %32 = sbr.rel target = $region3
    $region8: #{clip_forward.1} parent=1 // loop_exit
      _
    %2580 = vsyncpa [#allocation8], 1
    %s2581 = scalar_lea.sflag [#allocation8], 1
    %2582 = vsyncpa %s2581, 1
    %2583 = vsyncpa [#allocation11], 1
    %s2584 = scalar_lea.sflag [#allocation11], 1
    %2585 = vsyncpa %s2584, 1
    %2586 = vsyncpa [#allocation14], 1
    %s2587 = scalar_lea.sflag [#allocation14], 1
    %2588 = vsyncpa %s2587, 1
    %2589 = vsyncpa [#allocation9], 1
    %s2590 = scalar_lea.sflag [#allocation9], 1
    %2591 = vsyncpa %s2590, 1

</llo_original>
